<compile_context>
chip_gen: v7x
topology: tpu7x:2x2x1
jax: 0.10.0
libtpu: 0.0.40
codegen_flags: <defaults>
</compile_context>

<pallas_src>
import jax
import jax.numpy as jnp
from jax.experimental import pallas as pl
from jax.experimental.pallas import tpu as pltpu


def mlp8_kernel(b_ref, s_ref, wB1_ref, bB1_ref, wB2_ref, pack_ref,
                w1_ref, w2_ref, out_ref):
    f32 = jnp.float32
    out_dim = out_ref.shape[-1]

    # ---- B branch: the real MXU work (K=1024 and K=512 matmuls). ----
    xB1 = jnp.maximum(
        jnp.dot(b_ref[...], wB1_ref[...], preferred_element_type=f32)
        + bB1_ref[...], 0.0)
    xB2 = jnp.maximum(
        jnp.dot(xB1, wB2_ref[...], preferred_element_type=f32)
        + pack_ref[10:11, :], 0.0)

    # ---- fc1 on the concat [xB2 | xE | xF | xG | xH | xI] without
    # materializing the concat: sum per-chunk matmuls against w1 chunks. ----
    h1 = jnp.dot(xB2, w1_ref[0], preferred_element_type=f32) + pack_ref[11:12, :]

    s = s_ref[...]  # (tile_b, 5): columns are E, F, G, H, I
    for k in range(5):
        # Linear(1,64)+ReLU as a VPU broadcast multiply (avoids K=1 MXU dots).
        xk = jnp.maximum(
            s[:, k:k + 1] * pack_ref[k:k + 1, :] + pack_ref[5 + k:6 + k, :], 0.0)
        h1 = h1 + jnp.dot(xk, w1_ref[k + 1], preferred_element_type=f32)

    h1 = jnp.maximum(h1, 0.0)

    # ---- fc2 (no activation). ----
    out_ref[...] = (jnp.dot(h1, w2_ref[...], preferred_element_type=f32)
                    + pack_ref[12:13, 0:out_dim])


def mlp8_forward(A, B, C, D, E, F, G, H, I, params):
    """Matches MLPModel8.forward; A, C, D are unused by the reference forward."""
    del A, C, D
    (wB1, bB1, wB2, bB2,
     wE, bE, wF, bF, wG, bG, wH, bH, wI, bI,
     w1, b1, w2, b2) = params

    batch = B.shape[0]
    output_dim = w2.shape[1]

    # Pack the five scalar inputs and the small parameters into a few
    # contiguous buffers so the kernel sees 8 DMAs instead of ~20 tiny ones.
    S = jnp.concatenate([E, F, G, H, I], axis=1)                 # (batch, 5)
    Ws = jnp.concatenate([wE, wF, wG, wH, wI], axis=0)           # (5, 64)
    bs = jnp.concatenate([bE, bF, bG, bH, bI], axis=0)           # (5, 64)
    b2p = jnp.pad(b2, ((0, 0), (0, 64 - output_dim)))            # (1, 64)
    pack = jnp.concatenate([Ws, bs, bB2, b1, b2p], axis=0)       # (13, 64)
    w1_r = w1.reshape(6, 64, 64)                                 # chunked fc1 weight

    # 1-D grid over batch; weights use constant index maps so they stay
    # resident in VMEM across grid steps.
    tile_b = 512 if (batch % 512 == 0) else batch
    grid = (batch // tile_b,)

    act_map = lambda i: (i, 0)
    const2 = lambda i: (0, 0)
    const3 = lambda i: (0, 0, 0)

    return pl.pallas_call(
        mlp8_kernel,
        out_shape=jax.ShapeDtypeStruct((batch, output_dim), jnp.float32),
        grid=grid,
        in_specs=[
            pl.BlockSpec((tile_b, 1024), act_map),      # B
            pl.BlockSpec((tile_b, 5), act_map),         # stacked E,F,G,H,I
            pl.BlockSpec((1024, 512), const2),          # wB1
            pl.BlockSpec((1, 512), const2),             # bB1
            pl.BlockSpec((512, 64), const2),            # wB2
            pl.BlockSpec((13, 64), const2),             # packed small params
            pl.BlockSpec((6, 64, 64), const3),          # w1 chunks
            pl.BlockSpec((64, output_dim), const2),     # w2
        ],
        out_specs=pl.BlockSpec((tile_b, output_dim), act_map),
        compiler_params=pltpu.CompilerParams(
            dimension_semantics=("parallel",)),
    )(B, S, wB1, bB1, wB2, pack, w1_r, w2)


def init_params(key, output_dim):
    """Deterministic synthetic parameters (shapes from MLPModel8.__init__).

    Weights are stored pre-transposed as [in_features, out_features];
    biases as [1, out_features].
    """
    keys = jax.random.split(key, 18)

    def lin(kw, kb, fan_in, fan_out):
        bound = 1.0 / jnp.sqrt(jnp.float32(fan_in))
        w = jax.random.uniform(kw, (fan_in, fan_out), jnp.float32, -bound, bound)
        b = jax.random.uniform(kb, (1, fan_out), jnp.float32, -bound, bound)
        return w, b

    wB1, bB1 = lin(keys[0], keys[1], 1024, 512)    # fc_B1
    wB2, bB2 = lin(keys[2], keys[3], 512, 64)      # fc_B2
    wE, bE = lin(keys[4], keys[5], 1, 64)          # fc_E1
    wF, bF = lin(keys[6], keys[7], 1, 64)          # fc_F1
    wG, bG = lin(keys[8], keys[9], 1, 64)          # fc_G1
    wH, bH = lin(keys[10], keys[11], 1, 64)        # fc_H1
    wI, bI = lin(keys[12], keys[13], 1, 64)        # fc_I1
    w1, b1 = lin(keys[14], keys[15], 384, 64)      # fc1
    w2, b2 = lin(keys[16], keys[17], 64, output_dim)  # fc2
    return (wB1, bB1, wB2, bB2, wE, bE, wF, bF, wG, bG, wH, bH, wI, bI,
            w1, b1, w2, b2)


def reference_forward(Bx, E, F, G, H, I, params):
    """Pure-JAX reference of the PyTorch forward for a sanity check."""
    (wB1, bB1, wB2, bB2,
     wE, bE, wF, bF, wG, bG, wH, bH, wI, bI,
     w1, b1, w2, b2) = params
    xB1 = jnp.maximum(Bx @ wB1 + bB1, 0.0)
    xB2 = jnp.maximum(xB1 @ wB2 + bB2, 0.0)
    xE = jnp.maximum(E @ wE + bE, 0.0)
    xF = jnp.maximum(F @ wF + bF, 0.0)
    xG = jnp.maximum(G @ wG + bG, 0.0)
    xH = jnp.maximum(H @ wH + bH, 0.0)
    xI = jnp.maximum(I @ wI + bI, 0.0)
    x_all = jnp.concatenate([xB2, xE, xF, xG, xH, xI], axis=1)
    h1 = jnp.maximum(x_all @ w1 + b1, 0.0)
    return h1 @ w2 + b2


if __name__ == "__main__":
    batch = 8
    output_dim = 4

    key = jax.random.PRNGKey(0)
    kp, kA, kB, kC, kD, kE, kF, kG, kH, kI = jax.random.split(key, 10)

    params = init_params(kp, output_dim)

    # B is the 1024-wide input; the rest are scalar features [batch, 1].
    A = jax.random.normal(kA, (batch, 1), jnp.float32)
    Bx = jax.random.normal(kB, (batch, 1024), jnp.float32)
    C = jax.random.normal(kC, (batch, 1), jnp.float32)
    D = jax.random.normal(kD, (batch, 1), jnp.float32)
    E = jax.random.normal(kE, (batch, 1), jnp.float32)
    F = jax.random.normal(kF, (batch, 1), jnp.float32)
    G = jax.random.normal(kG, (batch, 1), jnp.float32)
    H = jax.random.normal(kH, (batch, 1), jnp.float32)
    I = jax.random.normal(kI, (batch, 1), jnp.float32)

    out = mlp8_forward(A, Bx, C, D, E, F, G, H, I, params)
    out = jax.block_until_ready(out)

    ref = reference_forward(Bx, E, F, G, H, I, params)
    assert out.shape == (batch, output_dim)
    max_err = float(jnp.max(jnp.abs(out - ref)))
    assert jnp.allclose(out, ref, atol=2e-4, rtol=2e-4), (
        f"mismatch vs reference (max abs err {max_err})")

    print("KERNEL_OK")
</pallas_src>

<mosaic_0001>
module attributes {stable_mosaic.version = 11 : i64} {
  func.func @mlp8_kernel(%arg0: i32, %arg1: memref<8x1024xf32, #tpu.memory_space<vmem>>, %arg2: memref<8x5xf32, #tpu.memory_space<vmem>>, %arg3: memref<1024x512xf32, #tpu.memory_space<vmem>>, %arg4: memref<1x512xf32, #tpu.memory_space<vmem>>, %arg5: memref<512x64xf32, #tpu.memory_space<vmem>>, %arg6: memref<13x64xf32, #tpu.memory_space<vmem>>, %arg7: memref<6x64x64xf32, #tpu.memory_space<vmem>>, %arg8: memref<64x4xf32, #tpu.memory_space<vmem>>, %arg9: memref<8x4xf32, #tpu.memory_space<vmem>>) attributes {dimension_semantics = [#tpu.dimension_semantics<parallel>], iteration_bounds = array<i64: 1>, scalar_prefetch = 0 : i64, scratch_operands = 0 : i64, tpu.core_type = #tpu.core_type<tc>, window_params = [{transform_indices = @transform_0, window_bounds = array<i64: 8, 1024>}, {transform_indices = @transform_1, window_bounds = array<i64: 8, 5>}, {pipeline_mode = #tpu.pipeline_mode<synchronous>, transform_indices = @transform_2, window_bounds = array<i64: 1024, 512>}, {pipeline_mode = #tpu.pipeline_mode<synchronous>, transform_indices = @transform_3, window_bounds = array<i64: 1, 512>}, {pipeline_mode = #tpu.pipeline_mode<synchronous>, transform_indices = @transform_4, window_bounds = array<i64: 512, 64>}, {pipeline_mode = #tpu.pipeline_mode<synchronous>, transform_indices = @transform_5, window_bounds = array<i64: 13, 64>}, {pipeline_mode = #tpu.pipeline_mode<synchronous>, transform_indices = @transform_6, window_bounds = array<i64: 6, 64, 64>}, {pipeline_mode = #tpu.pipeline_mode<synchronous>, transform_indices = @transform_7, window_bounds = array<i64: 64, 4>}, {transform_indices = @transform_8, window_bounds = array<i64: 8, 4>}]} {
    %c0 = arith.constant 0 : index
    %c0_0 = arith.constant 0 : index
    %0 = vector.load %arg1[%c0, %c0_0] : memref<8x1024xf32, #tpu.memory_space<vmem>>, vector<8x1024xf32>
    %c0_1 = arith.constant 0 : index
    %c0_2 = arith.constant 0 : index
    %1 = vector.load %arg3[%c0_1, %c0_2] : memref<1024x512xf32, #tpu.memory_space<vmem>>, vector<1024x512xf32>
    %cst = arith.constant dense<0.000000e+00> : vector<8x512xf32>
    %2 = tpu.matmul %0, %1, %cst {dimension_numbers = #tpu.dot_dimension_numbers<[1], [0], [0], [1], [0, 0, 1, 1], [], []>} : vector<8x1024xf32>, vector<1024x512xf32>, vector<8x512xf32> -> vector<8x512xf32>
    %c0_3 = arith.constant 0 : index
    %c0_4 = arith.constant 0 : index
    %3 = vector.load %arg4[%c0_3, %c0_4] : memref<1x512xf32, #tpu.memory_space<vmem>>, vector<1x512xf32>
    %4 = vector.broadcast %3 : vector<1x512xf32> to vector<8x512xf32>
    %5 = arith.addf %2, %4 : vector<8x512xf32>
    %cst_5 = arith.constant 0.000000e+00 : f32
    %6 = vector.broadcast %cst_5 : f32 to vector<8x512xf32>
    %7 = arith.maximumf %5, %6 : vector<8x512xf32>
    %c0_6 = arith.constant 0 : index
    %c0_7 = arith.constant 0 : index
    %8 = vector.load %arg5[%c0_6, %c0_7] : memref<512x64xf32, #tpu.memory_space<vmem>>, vector<512x64xf32>
    %cst_8 = arith.constant dense<0.000000e+00> : vector<8x64xf32>
    %9 = tpu.matmul %7, %8, %cst_8 {dimension_numbers = #tpu.dot_dimension_numbers<[1], [0], [0], [1], [0, 0, 1, 1], [], []>} : vector<8x512xf32>, vector<512x64xf32>, vector<8x64xf32> -> vector<8x64xf32>
    %c10 = arith.constant 10 : index
    %c0_9 = arith.constant 0 : index
    %10 = vector.load %arg6[%c10, %c0_9] : memref<13x64xf32, #tpu.memory_space<vmem>>, vector<1x64xf32>
    %11 = vector.broadcast %10 : vector<1x64xf32> to vector<8x64xf32>
    %12 = arith.addf %9, %11 : vector<8x64xf32>
    %cst_10 = arith.constant 0.000000e+00 : f32
    %13 = vector.broadcast %cst_10 : f32 to vector<8x64xf32>
    %14 = arith.maximumf %12, %13 : vector<8x64xf32>
    %c0_11 = arith.constant 0 : index
    %c0_12 = arith.constant 0 : index
    %c0_13 = arith.constant 0 : index
    %15 = vector.load %arg7[%c0_11, %c0_12, %c0_13] : memref<6x64x64xf32, #tpu.memory_space<vmem>>, vector<1x64x64xf32>
    %16 = vector.shape_cast %15 : vector<1x64x64xf32> to vector<64x64xf32>
    %cst_14 = arith.constant dense<0.000000e+00> : vector<8x64xf32>
    %17 = tpu.matmul %14, %16, %cst_14 {dimension_numbers = #tpu.dot_dimension_numbers<[1], [0], [0], [1], [0, 0, 1, 1], [], []>} : vector<8x64xf32>, vector<64x64xf32>, vector<8x64xf32> -> vector<8x64xf32>
    %c11 = arith.constant 11 : index
    %c0_15 = arith.constant 0 : index
    %18 = vector.load %arg6[%c11, %c0_15] : memref<13x64xf32, #tpu.memory_space<vmem>>, vector<1x64xf32>
    %19 = vector.broadcast %18 : vector<1x64xf32> to vector<8x64xf32>
    %20 = arith.addf %17, %19 : vector<8x64xf32>
    %c0_16 = arith.constant 0 : index
    %c0_17 = arith.constant 0 : index
    %21 = vector.load %arg2[%c0_16, %c0_17] : memref<8x5xf32, #tpu.memory_space<vmem>>, vector<8x5xf32>
    %22 = vector.extract_strided_slice %21 {offsets = [0, 0], sizes = [8, 1], strides = [1, 1]} : vector<8x5xf32> to vector<8x1xf32>
    %c0_18 = arith.constant 0 : index
    %c0_19 = arith.constant 0 : index
    %23 = vector.load %arg6[%c0_18, %c0_19] : memref<13x64xf32, #tpu.memory_space<vmem>>, vector<1x64xf32>
    %24 = vector.broadcast %22 : vector<8x1xf32> to vector<8x64xf32>
    %25 = vector.broadcast %23 : vector<1x64xf32> to vector<8x64xf32>
    %26 = arith.mulf %24, %25 : vector<8x64xf32>
    %c5 = arith.constant 5 : index
    %c0_20 = arith.constant 0 : index
    %27 = vector.load %arg6[%c5, %c0_20] : memref<13x64xf32, #tpu.memory_space<vmem>>, vector<1x64xf32>
    %28 = vector.broadcast %27 : vector<1x64xf32> to vector<8x64xf32>
    %29 = arith.addf %26, %28 : vector<8x64xf32>
    %cst_21 = arith.constant 0.000000e+00 : f32
    %30 = vector.broadcast %cst_21 : f32 to vector<8x64xf32>
    %31 = arith.maximumf %29, %30 : vector<8x64xf32>
    %c1 = arith.constant 1 : index
    %c0_22 = arith.constant 0 : index
    %c0_23 = arith.constant 0 : index
    %32 = vector.load %arg7[%c1, %c0_22, %c0_23] : memref<6x64x64xf32, #tpu.memory_space<vmem>>, vector<1x64x64xf32>
    %33 = vector.shape_cast %32 : vector<1x64x64xf32> to vector<64x64xf32>
    %cst_24 = arith.constant dense<0.000000e+00> : vector<8x64xf32>
    %34 = tpu.matmul %31, %33, %cst_24 {dimension_numbers = #tpu.dot_dimension_numbers<[1], [0], [0], [1], [0, 0, 1, 1], [], []>} : vector<8x64xf32>, vector<64x64xf32>, vector<8x64xf32> -> vector<8x64xf32>
    %35 = arith.addf %20, %34 : vector<8x64xf32>
    %36 = vector.extract_strided_slice %21 {offsets = [0, 1], sizes = [8, 1], strides = [1, 1]} : vector<8x5xf32> to vector<8x1xf32>
    %c1_25 = arith.constant 1 : index
    %c0_26 = arith.constant 0 : index
    %37 = vector.load %arg6[%c1_25, %c0_26] : memref<13x64xf32, #tpu.memory_space<vmem>>, vector<1x64xf32>
    %38 = vector.broadcast %36 : vector<8x1xf32> to vector<8x64xf32>
    %39 = vector.broadcast %37 : vector<1x64xf32> to vector<8x64xf32>
    %40 = arith.mulf %38, %39 : vector<8x64xf32>
    %c6 = arith.constant 6 : index
    %c0_27 = arith.constant 0 : index
    %41 = vector.load %arg6[%c6, %c0_27] : memref<13x64xf32, #tpu.memory_space<vmem>>, vector<1x64xf32>
    %42 = vector.broadcast %41 : vector<1x64xf32> to vector<8x64xf32>
    %43 = arith.addf %40, %42 : vector<8x64xf32>
    %cst_28 = arith.constant 0.000000e+00 : f32
    %44 = vector.broadcast %cst_28 : f32 to vector<8x64xf32>
    %45 = arith.maximumf %43, %44 : vector<8x64xf32>
    %c2 = arith.constant 2 : index
    %c0_29 = arith.constant 0 : index
    %c0_30 = arith.constant 0 : index
    %46 = vector.load %arg7[%c2, %c0_29, %c0_30] : memref<6x64x64xf32, #tpu.memory_space<vmem>>, vector<1x64x64xf32>
    %47 = vector.shape_cast %46 : vector<1x64x64xf32> to vector<64x64xf32>
    %cst_31 = arith.constant dense<0.000000e+00> : vector<8x64xf32>
    %48 = tpu.matmul %45, %47, %cst_31 {dimension_numbers = #tpu.dot_dimension_numbers<[1], [0], [0], [1], [0, 0, 1, 1], [], []>} : vector<8x64xf32>, vector<64x64xf32>, vector<8x64xf32> -> vector<8x64xf32>
    %49 = arith.addf %35, %48 : vector<8x64xf32>
    %50 = vector.extract_strided_slice %21 {offsets = [0, 2], sizes = [8, 1], strides = [1, 1]} : vector<8x5xf32> to vector<8x1xf32>
    %c2_32 = arith.constant 2 : index
    %c0_33 = arith.constant 0 : index
    %51 = vector.load %arg6[%c2_32, %c0_33] : memref<13x64xf32, #tpu.memory_space<vmem>>, vector<1x64xf32>
    %52 = vector.broadcast %50 : vector<8x1xf32> to vector<8x64xf32>
    %53 = vector.broadcast %51 : vector<1x64xf32> to vector<8x64xf32>
    %54 = arith.mulf %52, %53 : vector<8x64xf32>
    %c7 = arith.constant 7 : index
    %c0_34 = arith.constant 0 : index
    %55 = vector.load %arg6[%c7, %c0_34] : memref<13x64xf32, #tpu.memory_space<vmem>>, vector<1x64xf32>
    %56 = vector.broadcast %55 : vector<1x64xf32> to vector<8x64xf32>
    %57 = arith.addf %54, %56 : vector<8x64xf32>
    %cst_35 = arith.constant 0.000000e+00 : f32
    %58 = vector.broadcast %cst_35 : f32 to vector<8x64xf32>
    %59 = arith.maximumf %57, %58 : vector<8x64xf32>
    %c3 = arith.constant 3 : index
    %c0_36 = arith.constant 0 : index
    %c0_37 = arith.constant 0 : index
    %60 = vector.load %arg7[%c3, %c0_36, %c0_37] : memref<6x64x64xf32, #tpu.memory_space<vmem>>, vector<1x64x64xf32>
    %61 = vector.shape_cast %60 : vector<1x64x64xf32> to vector<64x64xf32>
    %cst_38 = arith.constant dense<0.000000e+00> : vector<8x64xf32>
    %62 = tpu.matmul %59, %61, %cst_38 {dimension_numbers = #tpu.dot_dimension_numbers<[1], [0], [0], [1], [0, 0, 1, 1], [], []>} : vector<8x64xf32>, vector<64x64xf32>, vector<8x64xf32> -> vector<8x64xf32>
    %63 = arith.addf %49, %62 : vector<8x64xf32>
    %64 = vector.extract_strided_slice %21 {offsets = [0, 3], sizes = [8, 1], strides = [1, 1]} : vector<8x5xf32> to vector<8x1xf32>
    %c3_39 = arith.constant 3 : index
    %c0_40 = arith.constant 0 : index
    %65 = vector.load %arg6[%c3_39, %c0_40] : memref<13x64xf32, #tpu.memory_space<vmem>>, vector<1x64xf32>
    %66 = vector.broadcast %64 : vector<8x1xf32> to vector<8x64xf32>
    %67 = vector.broadcast %65 : vector<1x64xf32> to vector<8x64xf32>
    %68 = arith.mulf %66, %67 : vector<8x64xf32>
    %c8 = arith.constant 8 : index
    %c0_41 = arith.constant 0 : index
    %69 = vector.load %arg6[%c8, %c0_41] : memref<13x64xf32, #tpu.memory_space<vmem>>, vector<1x64xf32>
    %70 = vector.broadcast %69 : vector<1x64xf32> to vector<8x64xf32>
    %71 = arith.addf %68, %70 : vector<8x64xf32>
    %cst_42 = arith.constant 0.000000e+00 : f32
    %72 = vector.broadcast %cst_42 : f32 to vector<8x64xf32>
    %73 = arith.maximumf %71, %72 : vector<8x64xf32>
    %c4 = arith.constant 4 : index
    %c0_43 = arith.constant 0 : index
    %c0_44 = arith.constant 0 : index
    %74 = vector.load %arg7[%c4, %c0_43, %c0_44] : memref<6x64x64xf32, #tpu.memory_space<vmem>>, vector<1x64x64xf32>
    %75 = vector.shape_cast %74 : vector<1x64x64xf32> to vector<64x64xf32>
    %cst_45 = arith.constant dense<0.000000e+00> : vector<8x64xf32>
    %76 = tpu.matmul %73, %75, %cst_45 {dimension_numbers = #tpu.dot_dimension_numbers<[1], [0], [0], [1], [0, 0, 1, 1], [], []>} : vector<8x64xf32>, vector<64x64xf32>, vector<8x64xf32> -> vector<8x64xf32>
    %77 = arith.addf %63, %76 : vector<8x64xf32>
    %78 = vector.extract_strided_slice %21 {offsets = [0, 4], sizes = [8, 1], strides = [1, 1]} : vector<8x5xf32> to vector<8x1xf32>
    %c4_46 = arith.constant 4 : index
    %c0_47 = arith.constant 0 : index
    %79 = vector.load %arg6[%c4_46, %c0_47] : memref<13x64xf32, #tpu.memory_space<vmem>>, vector<1x64xf32>
    %80 = vector.broadcast %78 : vector<8x1xf32> to vector<8x64xf32>
    %81 = vector.broadcast %79 : vector<1x64xf32> to vector<8x64xf32>
    %82 = arith.mulf %80, %81 : vector<8x64xf32>
    %c9 = arith.constant 9 : index
    %c0_48 = arith.constant 0 : index
    %83 = vector.load %arg6[%c9, %c0_48] : memref<13x64xf32, #tpu.memory_space<vmem>>, vector<1x64xf32>
    %84 = vector.broadcast %83 : vector<1x64xf32> to vector<8x64xf32>
    %85 = arith.addf %82, %84 : vector<8x64xf32>
    %cst_49 = arith.constant 0.000000e+00 : f32
    %86 = vector.broadcast %cst_49 : f32 to vector<8x64xf32>
    %87 = arith.maximumf %85, %86 : vector<8x64xf32>
    %c5_50 = arith.constant 5 : index
    %c0_51 = arith.constant 0 : index
    %c0_52 = arith.constant 0 : index
    %88 = vector.load %arg7[%c5_50, %c0_51, %c0_52] : memref<6x64x64xf32, #tpu.memory_space<vmem>>, vector<1x64x64xf32>
    %89 = vector.shape_cast %88 : vector<1x64x64xf32> to vector<64x64xf32>
    %cst_53 = arith.constant dense<0.000000e+00> : vector<8x64xf32>
    %90 = tpu.matmul %87, %89, %cst_53 {dimension_numbers = #tpu.dot_dimension_numbers<[1], [0], [0], [1], [0, 0, 1, 1], [], []>} : vector<8x64xf32>, vector<64x64xf32>, vector<8x64xf32> -> vector<8x64xf32>
    %91 = arith.addf %77, %90 : vector<8x64xf32>
    %cst_54 = arith.constant 0.000000e+00 : f32
    %92 = vector.broadcast %cst_54 : f32 to vector<8x64xf32>
    %93 = arith.maximumf %91, %92 : vector<8x64xf32>
    %c0_55 = arith.constant 0 : index
    %c0_56 = arith.constant 0 : index
    %94 = vector.load %arg8[%c0_55, %c0_56] : memref<64x4xf32, #tpu.memory_space<vmem>>, vector<64x4xf32>
    %cst_57 = arith.constant dense<0.000000e+00> : vector<8x4xf32>
    %95 = tpu.matmul %93, %94, %cst_57 {dimension_numbers = #tpu.dot_dimension_numbers<[1], [0], [0], [1], [0, 0, 1, 1], [], []>} : vector<8x64xf32>, vector<64x4xf32>, vector<8x4xf32> -> vector<8x4xf32>
    %c12 = arith.constant 12 : index
    %c0_58 = arith.constant 0 : index
    %96 = vector.load %arg6[%c12, %c0_58] : memref<13x64xf32, #tpu.memory_space<vmem>>, vector<1x4xf32>
    %97 = vector.broadcast %96 : vector<1x4xf32> to vector<8x4xf32>
    %98 = arith.addf %95, %97 : vector<8x4xf32>
    %c0_59 = arith.constant 0 : index
    %c0_60 = arith.constant 0 : index
    %99 = vector.load %arg9[%c0_59, %c0_60] : memref<8x4xf32, #tpu.memory_space<vmem>>, vector<8x4xf32>
    tpu.vector_store %arg9[%c0_59, %c0_60], %98 {strides = array<i32>} : memref<8x4xf32, #tpu.memory_space<vmem>>, vector<8x4xf32>,
    return
  }
  func.func @transform_0(%arg0: i32) -> (i32, i32) {
    %c0_i32 = arith.constant 0 : i32
    %c0_i32_0 = arith.constant 0 : i32
    return %arg0, %c0_i32 : i32, i32
  }
  func.func @transform_1(%arg0: i32) -> (i32, i32) {
    %c0_i32 = arith.constant 0 : i32
    %c0_i32_0 = arith.constant 0 : i32
    return %arg0, %c0_i32 : i32, i32
  }
  func.func @transform_2(%arg0: i32) -> (i32, i32) {
    %c0_i32 = arith.constant 0 : i32
    %c0_i32_0 = arith.constant 0 : i32
    %c0_i32_1 = arith.constant 0 : i32
    return %c0_i32, %c0_i32_0 : i32, i32
  }
  func.func @transform_3(%arg0: i32) -> (i32, i32) {
    %c0_i32 = arith.constant 0 : i32
    %c0_i32_0 = arith.constant 0 : i32
    %c0_i32_1 = arith.constant 0 : i32
    return %c0_i32, %c0_i32_0 : i32, i32
  }
  func.func @transform_4(%arg0: i32) -> (i32, i32) {
    %c0_i32 = arith.constant 0 : i32
    %c0_i32_0 = arith.constant 0 : i32
    %c0_i32_1 = arith.constant 0 : i32
    return %c0_i32, %c0_i32_0 : i32, i32
  }
  func.func @transform_5(%arg0: i32) -> (i32, i32) {
    %c0_i32 = arith.constant 0 : i32
    %c0_i32_0 = arith.constant 0 : i32
    %c0_i32_1 = arith.constant 0 : i32
    return %c0_i32, %c0_i32_0 : i32, i32
  }
  func.func @transform_6(%arg0: i32) -> (i32, i32, i32) {
    %c0_i32 = arith.constant 0 : i32
    %c0_i32_0 = arith.constant 0 : i32
    %c0_i32_1 = arith.constant 0 : i32
    %c0_i32_2 = arith.constant 0 : i32
    return %c0_i32, %c0_i32_0, %c0_i32_1 : i32, i32, i32
  }
  func.func @transform_7(%arg0: i32) -> (i32, i32) {
    %c0_i32 = arith.constant 0 : i32
    %c0_i32_0 = arith.constant 0 : i32
    %c0_i32_1 = arith.constant 0 : i32
    return %c0_i32, %c0_i32_0 : i32, i32
  }
  func.func @transform_8(%arg0: i32) -> (i32, i32) {
    %c0_i32 = arith.constant 0 : i32
    %c0_i32_0 = arith.constant 0 : i32
    return %arg0, %c0_i32 : i32, i32
  }
}

</mosaic_0001>

<llo_original>
// kernel: tpu_custom_call.1
$region0: #{tpu_custom_call.1}
  #allocation0 [shape = 'u32[]', space=smem, size = 0x4, offset = 0x4, fixed_abs, tag = 'smem constant byte address 0x4 - core index']
  #allocation1 [shape = 'u32[144,128]{1,0:T(1,128)}', space=vmem, size = 0x12000, scoped, tag = 'internal scratch']
  %s0 = inlined_call_operand.hbm [shape: f32[8,1024], index: 0, kind: input, shape index: {}]
  %s1 = inlined_call_operand.hbm [shape: f32[8,5], index: 1, kind: input, shape index: {}]
  %s2 = inlined_call_operand.hbm [shape: f32[1024,512], index: 2, kind: input, shape index: {}]
  %s3 = inlined_call_operand.hbm [shape: f32[1,512], index: 3, kind: input, shape index: {}]
  %s4 = inlined_call_operand.vmem [shape: f32[512,64], index: 4, kind: input, shape index: {}]
  %s5 = inlined_call_operand.hbm [shape: f32[13,64], index: 5, kind: input, shape index: {}]
  %s6 = inlined_call_operand.hbm [shape: f32[6,64,64], index: 6, kind: input, shape index: {}]
  %s7 = inlined_call_operand.vmem [shape: f32[64,4], index: 7, kind: input, shape index: {}]
  %s8 = inlined_call_operand.vmem [shape: f32[8,4], index: 8, kind: output, shape index: {}]
  %s9 = sld [smem:[#allocation0]]
  $region66: #{tpu_custom_call.1} parent=0
    _
  %s11 = ssub.s32 1, %s9
  %s12 = scalar_select 0, %s11, %s9
  $region1: #{tpu_custom_call.1} parent=0
    #allocation2 [shape = 'u8[32768]{0}', space=vmem, size = 0x8000, scoped, tag = 'input window, operand 0, single buffered']
    #allocation3 [shape = 's32[1]{0}', space=sflag, size = 0x4, scoped, tag = 'scoped memory for tpu_custom_call.1']
    #allocation4 [shape = 'u8[4096]{0}', space=vmem, size = 0x1000, scoped, tag = 'input window, operand 1, single buffered']
    #allocation5 [shape = 's32[1]{0}', space=sflag, size = 0x4, scoped, tag = 'scoped memory for tpu_custom_call.1']
    #allocation6 [shape = 'u8[2097152]{0}', space=vmem, size = 0x200000, scoped, tag = 'input window, operand 2, single buffered']
    #allocation7 [shape = 'u8[2048]{0}', space=vmem, size = 0x800, scoped, tag = 'input window, operand 3, single buffered']
    #allocation8 [shape = 's32[1]{0}', space=sflag, size = 0x4, scoped, tag = 'scoped memory for tpu_custom_call.1']
    #allocation9 [shape = 'u8[8192]{0}', space=vmem, size = 0x2000, scoped, tag = 'input window, operand 5, single buffered']
    #allocation10 [shape = 'u8[196608]{0}', space=vmem, size = 0x30000, scoped, tag = 'input window, operand 6, single buffered']
    #allocation11 [shape = 's32[1]{0}', space=sflag, size = 0x4, scoped, tag = 'scoped memory for tpu_custom_call.1']
    %13 = vsyncpa [#allocation3], 0
    %14 = vsyncpa [#allocation5], 0
    %15 = vsyncpa [#allocation8], 0
    %16 = vsyncpa [#allocation11], 0
    // Predicated region
    $region2: #{tpu_custom_call.1} parent=1 // pred_check
      _
    $region3: #{tpu_custom_call.1} parent=1 // pred_check_branch
      %18 = sbr.rel (0) target = $region5
    $region4: #{tpu_custom_call.1} parent=1 // pred_region
      %s20 = ssub.s32 1024, 1024
      %21 = vsyncadd [#allocation3], %s20
      %s23 = sshll.u32 [#allocation2], 4
      %s24 = int_to_ptr.vmem [resolvable:$true] %s23
      %26 = dma.hbm_to_vmem [thread:$0]  %s0, 1024, %s24, [#allocation3]
    $region5: #{tpu_custom_call.1} parent=1 // pred_fallthru
      _
    // Predicated region
    $region6: #{tpu_custom_call.1} parent=1 // pred_check
      _
    $region7: #{tpu_custom_call.1} parent=1 // pred_check_branch
      %28 = sbr.rel (0) target = $region9
    $region8: #{tpu_custom_call.1} parent=1 // pred_region
      %s30 = ssub.s32 128, 128
      %31 = vsyncadd [#allocation5], %s30
      %s33 = sshll.u32 [#allocation4], 4
      %s34 = int_to_ptr.vmem [resolvable:$true] %s33
      %36 = dma.hbm_to_vmem [thread:$0]  %s1, 128, %s34, [#allocation5]
    $region9: #{tpu_custom_call.1} parent=1 // pred_fallthru
      _
    // Predicated region
    $region10: #{tpu_custom_call.1} parent=1 // pred_check
      _
    $region11: #{tpu_custom_call.1} parent=1 // pred_check_branch
      %38 = sbr.rel (0) target = $region13
    $region12: #{tpu_custom_call.1} parent=1 // pred_region
      %s40 = ssub.s32 65536, 65536
      %41 = vsyncadd [#allocation5], %s40
      %s42 = sshll.u32 [#allocation6], 4
      %s43 = int_to_ptr.vmem [resolvable:$true] %s42
      %48 = dma.hbm_to_vmem [thread:$0]  %s2, 65536, %s43, [#allocation5], 512, 512, 32
    $region13: #{tpu_custom_call.1} parent=1 // pred_fallthru
      _
    // Predicated region
    $region14: #{tpu_custom_call.1} parent=1 // pred_check
      _
    $region15: #{tpu_custom_call.1} parent=1 // pred_check_branch
      %50 = sbr.rel (0) target = $region17
    $region16: #{tpu_custom_call.1} parent=1 // pred_region
      %s52 = ssub.s32 64, 64
      %53 = vsyncadd [#allocation8], %s52
      %s55 = sshll.u32 [#allocation7], 4
      %s56 = int_to_ptr.vmem [resolvable:$true] %s55
      %58 = dma.hbm_to_vmem [thread:$0]  %s3, 64, %s56, [#allocation8]
    $region17: #{tpu_custom_call.1} parent=1 // pred_fallthru
      _
    // Predicated region
    $region18: #{tpu_custom_call.1} parent=1 // pred_check
      _
    $region19: #{tpu_custom_call.1} parent=1 // pred_check_branch
      %60 = sbr.rel (0) target = $region21
    $region20: #{tpu_custom_call.1} parent=1 // pred_region
      _
    $region21: #{tpu_custom_call.1} parent=1 // pred_fallthru
      _
    // Predicated region
    $region22: #{tpu_custom_call.1} parent=1 // pred_check
      _
    $region23: #{tpu_custom_call.1} parent=1 // pred_check_branch
      %62 = sbr.rel (0) target = $region25
    $region24: #{tpu_custom_call.1} parent=1 // pred_region
      %s64 = ssub.s32 256, 256
      %65 = vsyncadd [#allocation8], %s64
      %s66 = sshll.u32 [#allocation9], 4
      %s67 = int_to_ptr.vmem [resolvable:$true] %s66
      %72 = dma.hbm_to_vmem [thread:$0]  %s5, 256, %s67, [#allocation8], 128, 128, 8
    $region25: #{tpu_custom_call.1} parent=1 // pred_fallthru
      _
    // Predicated region
    $region26: #{tpu_custom_call.1} parent=1 // pred_check
      _
    $region27: #{tpu_custom_call.1} parent=1 // pred_check_branch
      %74 = sbr.rel (0) target = $region29
    $region28: #{tpu_custom_call.1} parent=1 // pred_region
      %s76 = ssub.s32 6144, 6144
      %77 = vsyncadd [#allocation11], %s76
      %s78 = sshll.u32 [#allocation10], 4
      %s79 = int_to_ptr.vmem [resolvable:$true] %s78
      %84 = dma.hbm_to_vmem [thread:$0]  %s6, 6144, %s79, [#allocation11], 128, 128, 8
    $region29: #{tpu_custom_call.1} parent=1 // pred_fallthru
      _
    // Predicated region
    $region30: #{tpu_custom_call.1} parent=1 // pred_check
      _
    $region31: #{tpu_custom_call.1} parent=1 // pred_check_branch
      %86 = sbr.rel (0) target = $region33
    $region32: #{tpu_custom_call.1} parent=1 // pred_region
      _
    $region33: #{tpu_custom_call.1} parent=1 // pred_fallthru
      _
    // Predicated region
    $region34: #{tpu_custom_call.1} parent=1 // pred_check
      _
    $region35: #{tpu_custom_call.1} parent=1 // pred_check_branch
      %88 = sbr.rel (0) target = $region37
    $region36: #{tpu_custom_call.1} parent=1 // pred_region
      %89 = dma.done [#allocation3], 1024
    $region37: #{tpu_custom_call.1} parent=1 // pred_fallthru
      _
    // Predicated region
    $region38: #{tpu_custom_call.1} parent=1 // pred_check
      _
    $region39: #{tpu_custom_call.1} parent=1 // pred_check_branch
      %91 = sbr.rel (0) target = $region41
    $region40: #{tpu_custom_call.1} parent=1 // pred_region
      %92 = dma.done [#allocation5], 128
    $region41: #{tpu_custom_call.1} parent=1 // pred_fallthru
      _
    // Predicated region
    $region42: #{tpu_custom_call.1} parent=1 // pred_check
      _
    $region43: #{tpu_custom_call.1} parent=1 // pred_check_branch
      %94 = sbr.rel (0) target = $region45
    $region44: #{tpu_custom_call.1} parent=1 // pred_region
      %95 = dma.done [#allocation5], 65536
    $region45: #{tpu_custom_call.1} parent=1 // pred_fallthru
      _
    // Predicated region
    $region46: #{tpu_custom_call.1} parent=1 // pred_check
      _
    $region47: #{tpu_custom_call.1} parent=1 // pred_check_branch
      %97 = sbr.rel (0) target = $region49
    $region48: #{tpu_custom_call.1} parent=1 // pred_region
      %98 = dma.done [#allocation8], 64
    $region49: #{tpu_custom_call.1} parent=1 // pred_fallthru
      _
    // Predicated region
    $region50: #{tpu_custom_call.1} parent=1 // pred_check
      _
    $region51: #{tpu_custom_call.1} parent=1 // pred_check_branch
      %100 = sbr.rel (0) target = $region53
    $region52: #{tpu_custom_call.1} parent=1 // pred_region
      %101 = dma.done [#allocation8], 256
    $region53: #{tpu_custom_call.1} parent=1 // pred_fallthru
      _
    // Predicated region
    $region54: #{tpu_custom_call.1} parent=1 // pred_check
      _
    $region55: #{tpu_custom_call.1} parent=1 // pred_check_branch
      %103 = sbr.rel (0) target = $region57
    $region56: #{tpu_custom_call.1} parent=1 // pred_region
      %104 = dma.done [#allocation11], 6144
    $region57: #{tpu_custom_call.1} parent=1 // pred_fallthru
      _
    %v105 = vld [vmem:[#allocation2] sm:$0xff]
    %v106 = vld [vmem:[#allocation2 + $0x8] sm:$0xff]
    %v107 = vld [vmem:[#allocation2 + $0x10] sm:$0xff]
    %v108 = vld [vmem:[#allocation2 + $0x18] sm:$0xff]
    %v109 = vld [vmem:[#allocation2 + $0x20] sm:$0xff]
    %v110 = vld [vmem:[#allocation2 + $0x28] sm:$0xff]
    %v111 = vld [vmem:[#allocation2 + $0x30] sm:$0xff]
    %v112 = vld [vmem:[#allocation2 + $0x38] sm:$0xff]
    %v113 = vld [vmem:[#allocation6] sm:$0xff]
    %v114 = vld [vmem:[#allocation6 + $0x8] sm:$0xff]
    %v115 = vld [vmem:[#allocation6 + $0x10] sm:$0xff]
    %v116 = vld [vmem:[#allocation6 + $0x18] sm:$0xff]
    %v117 = vld [vmem:[#allocation6 + $0x20] sm:$0xff]
    %v118 = vld [vmem:[#allocation6 + $0x28] sm:$0xff]
    %v119 = vld [vmem:[#allocation6 + $0x30] sm:$0xff]
    %v120 = vld [vmem:[#allocation6 + $0x38] sm:$0xff]
    %v121 = vld [vmem:[#allocation6 + $0x40] sm:$0xff]
    %v122 = vld [vmem:[#allocation6 + $0x48] sm:$0xff]
    %v123 = vld [vmem:[#allocation6 + $0x50] sm:$0xff]
    %v124 = vld [vmem:[#allocation6 + $0x58] sm:$0xff]
    %v125 = vld [vmem:[#allocation6 + $0x60] sm:$0xff]
    %v126 = vld [vmem:[#allocation6 + $0x68] sm:$0xff]
    %v127 = vld [vmem:[#allocation6 + $0x70] sm:$0xff]
    %v128 = vld [vmem:[#allocation6 + $0x78] sm:$0xff]
    %v129 = vld [vmem:[#allocation6 + $0x80] sm:$0xff]
    %v130 = vld [vmem:[#allocation6 + $0x88] sm:$0xff]
    %v131 = vld [vmem:[#allocation6 + $0x90] sm:$0xff]
    %v132 = vld [vmem:[#allocation6 + $0x98] sm:$0xff]
    %v133 = vld [vmem:[#allocation6 + $0xa0] sm:$0xff]
    %v134 = vld [vmem:[#allocation6 + $0xa8] sm:$0xff]
    %v135 = vld [vmem:[#allocation6 + $0xb0] sm:$0xff]
    %v136 = vld [vmem:[#allocation6 + $0xb8] sm:$0xff]
    %v137 = vld [vmem:[#allocation6 + $0xc0] sm:$0xff]
    %v138 = vld [vmem:[#allocation6 + $0xc8] sm:$0xff]
    %v139 = vld [vmem:[#allocation6 + $0xd0] sm:$0xff]
    %v140 = vld [vmem:[#allocation6 + $0xd8] sm:$0xff]
    %v141 = vld [vmem:[#allocation6 + $0xe0] sm:$0xff]
    %v142 = vld [vmem:[#allocation6 + $0xe8] sm:$0xff]
    %v143 = vld [vmem:[#allocation6 + $0xf0] sm:$0xff]
    %v144 = vld [vmem:[#allocation6 + $0xf8] sm:$0xff]
    %v145 = vld [vmem:[#allocation6 + $0x100] sm:$0xff]
    %v146 = vld [vmem:[#allocation6 + $0x108] sm:$0xff]
    %v147 = vld [vmem:[#allocation6 + $0x110] sm:$0xff]
    %v148 = vld [vmem:[#allocation6 + $0x118] sm:$0xff]
    %v149 = vld [vmem:[#allocation6 + $0x120] sm:$0xff]
    %v150 = vld [vmem:[#allocation6 + $0x128] sm:$0xff]
    %v151 = vld [vmem:[#allocation6 + $0x130] sm:$0xff]
    %v152 = vld [vmem:[#allocation6 + $0x138] sm:$0xff]
    %v153 = vld [vmem:[#allocation6 + $0x140] sm:$0xff]
    %v154 = vld [vmem:[#allocation6 + $0x148] sm:$0xff]
    %v155 = vld [vmem:[#allocation6 + $0x150] sm:$0xff]
    %v156 = vld [vmem:[#allocation6 + $0x158] sm:$0xff]
    %v157 = vld [vmem:[#allocation6 + $0x160] sm:$0xff]
    %v158 = vld [vmem:[#allocation6 + $0x168] sm:$0xff]
    %v159 = vld [vmem:[#allocation6 + $0x170] sm:$0xff]
    %v160 = vld [vmem:[#allocation6 + $0x178] sm:$0xff]
    %v161 = vld [vmem:[#allocation6 + $0x180] sm:$0xff]
    %v162 = vld [vmem:[#allocation6 + $0x188] sm:$0xff]
    %v163 = vld [vmem:[#allocation6 + $0x190] sm:$0xff]
    %v164 = vld [vmem:[#allocation6 + $0x198] sm:$0xff]
    %v165 = vld [vmem:[#allocation6 + $0x1a0] sm:$0xff]
    %v166 = vld [vmem:[#allocation6 + $0x1a8] sm:$0xff]
    %v167 = vld [vmem:[#allocation6 + $0x1b0] sm:$0xff]
    %v168 = vld [vmem:[#allocation6 + $0x1b8] sm:$0xff]
    %v169 = vld [vmem:[#allocation6 + $0x1c0] sm:$0xff]
    %v170 = vld [vmem:[#allocation6 + $0x1c8] sm:$0xff]
    %v171 = vld [vmem:[#allocation6 + $0x1d0] sm:$0xff]
    %v172 = vld [vmem:[#allocation6 + $0x1d8] sm:$0xff]
    %v173 = vld [vmem:[#allocation6 + $0x1e0] sm:$0xff]
    %v174 = vld [vmem:[#allocation6 + $0x1e8] sm:$0xff]
    %v175 = vld [vmem:[#allocation6 + $0x1f0] sm:$0xff]
    %v176 = vld [vmem:[#allocation6 + $0x1f8] sm:$0xff]
    %v177 = vld [vmem:[#allocation6 + $0x200] sm:$0xff]
    %v178 = vld [vmem:[#allocation6 + $0x208] sm:$0xff]
    %v179 = vld [vmem:[#allocation6 + $0x210] sm:$0xff]
    %v180 = vld [vmem:[#allocation6 + $0x218] sm:$0xff]
    %v181 = vld [vmem:[#allocation6 + $0x220] sm:$0xff]
    %v182 = vld [vmem:[#allocation6 + $0x228] sm:$0xff]
    %v183 = vld [vmem:[#allocation6 + $0x230] sm:$0xff]
    %v184 = vld [vmem:[#allocation6 + $0x238] sm:$0xff]
    %v185 = vld [vmem:[#allocation6 + $0x240] sm:$0xff]
    %v186 = vld [vmem:[#allocation6 + $0x248] sm:$0xff]
    %v187 = vld [vmem:[#allocation6 + $0x250] sm:$0xff]
    %v188 = vld [vmem:[#allocation6 + $0x258] sm:$0xff]
    %v189 = vld [vmem:[#allocation6 + $0x260] sm:$0xff]
    %v190 = vld [vmem:[#allocation6 + $0x268] sm:$0xff]
    %v191 = vld [vmem:[#allocation6 + $0x270] sm:$0xff]
    %v192 = vld [vmem:[#allocation6 + $0x278] sm:$0xff]
    %v193 = vld [vmem:[#allocation6 + $0x280] sm:$0xff]
    %v194 = vld [vmem:[#allocation6 + $0x288] sm:$0xff]
    %v195 = vld [vmem:[#allocation6 + $0x290] sm:$0xff]
    %v196 = vld [vmem:[#allocation6 + $0x298] sm:$0xff]
    %v197 = vld [vmem:[#allocation6 + $0x2a0] sm:$0xff]
    %v198 = vld [vmem:[#allocation6 + $0x2a8] sm:$0xff]
    %v199 = vld [vmem:[#allocation6 + $0x2b0] sm:$0xff]
    %v200 = vld [vmem:[#allocation6 + $0x2b8] sm:$0xff]
    %v201 = vld [vmem:[#allocation6 + $0x2c0] sm:$0xff]
    %v202 = vld [vmem:[#allocation6 + $0x2c8] sm:$0xff]
    %v203 = vld [vmem:[#allocation6 + $0x2d0] sm:$0xff]
    %v204 = vld [vmem:[#allocation6 + $0x2d8] sm:$0xff]
    %v205 = vld [vmem:[#allocation6 + $0x2e0] sm:$0xff]
    %v206 = vld [vmem:[#allocation6 + $0x2e8] sm:$0xff]
    %v207 = vld [vmem:[#allocation6 + $0x2f0] sm:$0xff]
    %v208 = vld [vmem:[#allocation6 + $0x2f8] sm:$0xff]
    %v209 = vld [vmem:[#allocation6 + $0x300] sm:$0xff]
    %v210 = vld [vmem:[#allocation6 + $0x308] sm:$0xff]
    %v211 = vld [vmem:[#allocation6 + $0x310] sm:$0xff]
    %v212 = vld [vmem:[#allocation6 + $0x318] sm:$0xff]
    %v213 = vld [vmem:[#allocation6 + $0x320] sm:$0xff]
    %v214 = vld [vmem:[#allocation6 + $0x328] sm:$0xff]
    %v215 = vld [vmem:[#allocation6 + $0x330] sm:$0xff]
    %v216 = vld [vmem:[#allocation6 + $0x338] sm:$0xff]
    %v217 = vld [vmem:[#allocation6 + $0x340] sm:$0xff]
    %v218 = vld [vmem:[#allocation6 + $0x348] sm:$0xff]
    %v219 = vld [vmem:[#allocation6 + $0x350] sm:$0xff]
    %v220 = vld [vmem:[#allocation6 + $0x358] sm:$0xff]
    %v221 = vld [vmem:[#allocation6 + $0x360] sm:$0xff]
    %v222 = vld [vmem:[#allocation6 + $0x368] sm:$0xff]
    %v223 = vld [vmem:[#allocation6 + $0x370] sm:$0xff]
    %v224 = vld [vmem:[#allocation6 + $0x378] sm:$0xff]
    %v225 = vld [vmem:[#allocation6 + $0x380] sm:$0xff]
    %v226 = vld [vmem:[#allocation6 + $0x388] sm:$0xff]
    %v227 = vld [vmem:[#allocation6 + $0x390] sm:$0xff]
    %v228 = vld [vmem:[#allocation6 + $0x398] sm:$0xff]
    %v229 = vld [vmem:[#allocation6 + $0x3a0] sm:$0xff]
    %v230 = vld [vmem:[#allocation6 + $0x3a8] sm:$0xff]
    %v231 = vld [vmem:[#allocation6 + $0x3b0] sm:$0xff]
    %v232 = vld [vmem:[#allocation6 + $0x3b8] sm:$0xff]
    %v233 = vld [vmem:[#allocation6 + $0x3c0] sm:$0xff]
    %v234 = vld [vmem:[#allocation6 + $0x3c8] sm:$0xff]
    %v235 = vld [vmem:[#allocation6 + $0x3d0] sm:$0xff]
    %v236 = vld [vmem:[#allocation6 + $0x3d8] sm:$0xff]
    %v237 = vld [vmem:[#allocation6 + $0x3e0] sm:$0xff]
    %v238 = vld [vmem:[#allocation6 + $0x3e8] sm:$0xff]
    %v239 = vld [vmem:[#allocation6 + $0x3f0] sm:$0xff]
    %v240 = vld [vmem:[#allocation6 + $0x3f8] sm:$0xff]
    %v241 = vld [vmem:[#allocation6 + $0x400] sm:$0xff]
    %v242 = vld [vmem:[#allocation6 + $0x408] sm:$0xff]
    %v243 = vld [vmem:[#allocation6 + $0x410] sm:$0xff]
    %v244 = vld [vmem:[#allocation6 + $0x418] sm:$0xff]
    %v245 = vld [vmem:[#allocation6 + $0x420] sm:$0xff]
    %v246 = vld [vmem:[#allocation6 + $0x428] sm:$0xff]
    %v247 = vld [vmem:[#allocation6 + $0x430] sm:$0xff]
    %v248 = vld [vmem:[#allocation6 + $0x438] sm:$0xff]
    %v249 = vld [vmem:[#allocation6 + $0x440] sm:$0xff]
    %v250 = vld [vmem:[#allocation6 + $0x448] sm:$0xff]
    %v251 = vld [vmem:[#allocation6 + $0x450] sm:$0xff]
    %v252 = vld [vmem:[#allocation6 + $0x458] sm:$0xff]
    %v253 = vld [vmem:[#allocation6 + $0x460] sm:$0xff]
    %v254 = vld [vmem:[#allocation6 + $0x468] sm:$0xff]
    %v255 = vld [vmem:[#allocation6 + $0x470] sm:$0xff]
    %v256 = vld [vmem:[#allocation6 + $0x478] sm:$0xff]
    %v257 = vld [vmem:[#allocation6 + $0x480] sm:$0xff]
    %v258 = vld [vmem:[#allocation6 + $0x488] sm:$0xff]
    %v259 = vld [vmem:[#allocation6 + $0x490] sm:$0xff]
    %v260 = vld [vmem:[#allocation6 + $0x498] sm:$0xff]
    %v261 = vld [vmem:[#allocation6 + $0x4a0] sm:$0xff]
    %v262 = vld [vmem:[#allocation6 + $0x4a8] sm:$0xff]
    %v263 = vld [vmem:[#allocation6 + $0x4b0] sm:$0xff]
    %v264 = vld [vmem:[#allocation6 + $0x4b8] sm:$0xff]
    %v265 = vld [vmem:[#allocation6 + $0x4c0] sm:$0xff]
    %v266 = vld [vmem:[#allocation6 + $0x4c8] sm:$0xff]
    %v267 = vld [vmem:[#allocation6 + $0x4d0] sm:$0xff]
    %v268 = vld [vmem:[#allocation6 + $0x4d8] sm:$0xff]
    %v269 = vld [vmem:[#allocation6 + $0x4e0] sm:$0xff]
    %v270 = vld [vmem:[#allocation6 + $0x4e8] sm:$0xff]
    %v271 = vld [vmem:[#allocation6 + $0x4f0] sm:$0xff]
    %v272 = vld [vmem:[#allocation6 + $0x4f8] sm:$0xff]
    %v273 = vld [vmem:[#allocation6 + $0x500] sm:$0xff]
    %v274 = vld [vmem:[#allocation6 + $0x508] sm:$0xff]
    %v275 = vld [vmem:[#allocation6 + $0x510] sm:$0xff]
    %v276 = vld [vmem:[#allocation6 + $0x518] sm:$0xff]
    %v277 = vld [vmem:[#allocation6 + $0x520] sm:$0xff]
    %v278 = vld [vmem:[#allocation6 + $0x528] sm:$0xff]
    %v279 = vld [vmem:[#allocation6 + $0x530] sm:$0xff]
    %v280 = vld [vmem:[#allocation6 + $0x538] sm:$0xff]
    %v281 = vld [vmem:[#allocation6 + $0x540] sm:$0xff]
    %v282 = vld [vmem:[#allocation6 + $0x548] sm:$0xff]
    %v283 = vld [vmem:[#allocation6 + $0x550] sm:$0xff]
    %v284 = vld [vmem:[#allocation6 + $0x558] sm:$0xff]
    %v285 = vld [vmem:[#allocation6 + $0x560] sm:$0xff]
    %v286 = vld [vmem:[#allocation6 + $0x568] sm:$0xff]
    %v287 = vld [vmem:[#allocation6 + $0x570] sm:$0xff]
    %v288 = vld [vmem:[#allocation6 + $0x578] sm:$0xff]
    %v289 = vld [vmem:[#allocation6 + $0x580] sm:$0xff]
    %v290 = vld [vmem:[#allocation6 + $0x588] sm:$0xff]
    %v291 = vld [vmem:[#allocation6 + $0x590] sm:$0xff]
    %v292 = vld [vmem:[#allocation6 + $0x598] sm:$0xff]
    %v293 = vld [vmem:[#allocation6 + $0x5a0] sm:$0xff]
    %v294 = vld [vmem:[#allocation6 + $0x5a8] sm:$0xff]
    %v295 = vld [vmem:[#allocation6 + $0x5b0] sm:$0xff]
    %v296 = vld [vmem:[#allocation6 + $0x5b8] sm:$0xff]
    %v297 = vld [vmem:[#allocation6 + $0x5c0] sm:$0xff]
    %v298 = vld [vmem:[#allocation6 + $0x5c8] sm:$0xff]
    %v299 = vld [vmem:[#allocation6 + $0x5d0] sm:$0xff]
    %v300 = vld [vmem:[#allocation6 + $0x5d8] sm:$0xff]
    %v301 = vld [vmem:[#allocation6 + $0x5e0] sm:$0xff]
    %v302 = vld [vmem:[#allocation6 + $0x5e8] sm:$0xff]
    %v303 = vld [vmem:[#allocation6 + $0x5f0] sm:$0xff]
    %v304 = vld [vmem:[#allocation6 + $0x5f8] sm:$0xff]
    %v305 = vld [vmem:[#allocation6 + $0x600] sm:$0xff]
    %v306 = vld [vmem:[#allocation6 + $0x608] sm:$0xff]
    %v307 = vld [vmem:[#allocation6 + $0x610] sm:$0xff]
    %v308 = vld [vmem:[#allocation6 + $0x618] sm:$0xff]
    %v309 = vld [vmem:[#allocation6 + $0x620] sm:$0xff]
    %v310 = vld [vmem:[#allocation6 + $0x628] sm:$0xff]
    %v311 = vld [vmem:[#allocation6 + $0x630] sm:$0xff]
    %v312 = vld [vmem:[#allocation6 + $0x638] sm:$0xff]
    %v313 = vld [vmem:[#allocation6 + $0x640] sm:$0xff]
    %v314 = vld [vmem:[#allocation6 + $0x648] sm:$0xff]
    %v315 = vld [vmem:[#allocation6 + $0x650] sm:$0xff]
    %v316 = vld [vmem:[#allocation6 + $0x658] sm:$0xff]
    %v317 = vld [vmem:[#allocation6 + $0x660] sm:$0xff]
    %v318 = vld [vmem:[#allocation6 + $0x668] sm:$0xff]
    %v319 = vld [vmem:[#allocation6 + $0x670] sm:$0xff]
    %v320 = vld [vmem:[#allocation6 + $0x678] sm:$0xff]
    %v321 = vld [vmem:[#allocation6 + $0x680] sm:$0xff]
    %v322 = vld [vmem:[#allocation6 + $0x688] sm:$0xff]
    %v323 = vld [vmem:[#allocation6 + $0x690] sm:$0xff]
    %v324 = vld [vmem:[#allocation6 + $0x698] sm:$0xff]
    %v325 = vld [vmem:[#allocation6 + $0x6a0] sm:$0xff]
    %v326 = vld [vmem:[#allocation6 + $0x6a8] sm:$0xff]
    %v327 = vld [vmem:[#allocation6 + $0x6b0] sm:$0xff]
    %v328 = vld [vmem:[#allocation6 + $0x6b8] sm:$0xff]
    %v329 = vld [vmem:[#allocation6 + $0x6c0] sm:$0xff]
    %v330 = vld [vmem:[#allocation6 + $0x6c8] sm:$0xff]
    %v331 = vld [vmem:[#allocation6 + $0x6d0] sm:$0xff]
    %v332 = vld [vmem:[#allocation6 + $0x6d8] sm:$0xff]
    %v333 = vld [vmem:[#allocation6 + $0x6e0] sm:$0xff]
    %v334 = vld [vmem:[#allocation6 + $0x6e8] sm:$0xff]
    %v335 = vld [vmem:[#allocation6 + $0x6f0] sm:$0xff]
    %v336 = vld [vmem:[#allocation6 + $0x6f8] sm:$0xff]
    %v337 = vld [vmem:[#allocation6 + $0x700] sm:$0xff]
    %v338 = vld [vmem:[#allocation6 + $0x708] sm:$0xff]
    %v339 = vld [vmem:[#allocation6 + $0x710] sm:$0xff]
    %v340 = vld [vmem:[#allocation6 + $0x718] sm:$0xff]
    %v341 = vld [vmem:[#allocation6 + $0x720] sm:$0xff]
    %v342 = vld [vmem:[#allocation6 + $0x728] sm:$0xff]
    %v343 = vld [vmem:[#allocation6 + $0x730] sm:$0xff]
    %v344 = vld [vmem:[#allocation6 + $0x738] sm:$0xff]
    %v345 = vld [vmem:[#allocation6 + $0x740] sm:$0xff]
    %v346 = vld [vmem:[#allocation6 + $0x748] sm:$0xff]
    %v347 = vld [vmem:[#allocation6 + $0x750] sm:$0xff]
    %v348 = vld [vmem:[#allocation6 + $0x758] sm:$0xff]
    %v349 = vld [vmem:[#allocation6 + $0x760] sm:$0xff]
    %v350 = vld [vmem:[#allocation6 + $0x768] sm:$0xff]
    %v351 = vld [vmem:[#allocation6 + $0x770] sm:$0xff]
    %v352 = vld [vmem:[#allocation6 + $0x778] sm:$0xff]
    %v353 = vld [vmem:[#allocation6 + $0x780] sm:$0xff]
    %v354 = vld [vmem:[#allocation6 + $0x788] sm:$0xff]
    %v355 = vld [vmem:[#allocation6 + $0x790] sm:$0xff]
    %v356 = vld [vmem:[#allocation6 + $0x798] sm:$0xff]
    %v357 = vld [vmem:[#allocation6 + $0x7a0] sm:$0xff]
    %v358 = vld [vmem:[#allocation6 + $0x7a8] sm:$0xff]
    %v359 = vld [vmem:[#allocation6 + $0x7b0] sm:$0xff]
    %v360 = vld [vmem:[#allocation6 + $0x7b8] sm:$0xff]
    %v361 = vld [vmem:[#allocation6 + $0x7c0] sm:$0xff]
    %v362 = vld [vmem:[#allocation6 + $0x7c8] sm:$0xff]
    %v363 = vld [vmem:[#allocation6 + $0x7d0] sm:$0xff]
    %v364 = vld [vmem:[#allocation6 + $0x7d8] sm:$0xff]
    %v365 = vld [vmem:[#allocation6 + $0x7e0] sm:$0xff]
    %v366 = vld [vmem:[#allocation6 + $0x7e8] sm:$0xff]
    %v367 = vld [vmem:[#allocation6 + $0x7f0] sm:$0xff]
    %v368 = vld [vmem:[#allocation6 + $0x7f8] sm:$0xff]
    %v369 = vld [vmem:[#allocation6 + $0x800] sm:$0xff]
    %v370 = vld [vmem:[#allocation6 + $0x808] sm:$0xff]
    %v371 = vld [vmem:[#allocation6 + $0x810] sm:$0xff]
    %v372 = vld [vmem:[#allocation6 + $0x818] sm:$0xff]
    %v373 = vld [vmem:[#allocation6 + $0x820] sm:$0xff]
    %v374 = vld [vmem:[#allocation6 + $0x828] sm:$0xff]
    %v375 = vld [vmem:[#allocation6 + $0x830] sm:$0xff]
    %v376 = vld [vmem:[#allocation6 + $0x838] sm:$0xff]
    %v377 = vld [vmem:[#allocation6 + $0x840] sm:$0xff]
    %v378 = vld [vmem:[#allocation6 + $0x848] sm:$0xff]
    %v379 = vld [vmem:[#allocation6 + $0x850] sm:$0xff]
    %v380 = vld [vmem:[#allocation6 + $0x858] sm:$0xff]
    %v381 = vld [vmem:[#allocation6 + $0x860] sm:$0xff]
    %v382 = vld [vmem:[#allocation6 + $0x868] sm:$0xff]
    %v383 = vld [vmem:[#allocation6 + $0x870] sm:$0xff]
    %v384 = vld [vmem:[#allocation6 + $0x878] sm:$0xff]
    %v385 = vld [vmem:[#allocation6 + $0x880] sm:$0xff]
    %v386 = vld [vmem:[#allocation6 + $0x888] sm:$0xff]
    %v387 = vld [vmem:[#allocation6 + $0x890] sm:$0xff]
    %v388 = vld [vmem:[#allocation6 + $0x898] sm:$0xff]
    %v389 = vld [vmem:[#allocation6 + $0x8a0] sm:$0xff]
    %v390 = vld [vmem:[#allocation6 + $0x8a8] sm:$0xff]
    %v391 = vld [vmem:[#allocation6 + $0x8b0] sm:$0xff]
    %v392 = vld [vmem:[#allocation6 + $0x8b8] sm:$0xff]
    %v393 = vld [vmem:[#allocation6 + $0x8c0] sm:$0xff]
    %v394 = vld [vmem:[#allocation6 + $0x8c8] sm:$0xff]
    %v395 = vld [vmem:[#allocation6 + $0x8d0] sm:$0xff]
    %v396 = vld [vmem:[#allocation6 + $0x8d8] sm:$0xff]
    %v397 = vld [vmem:[#allocation6 + $0x8e0] sm:$0xff]
    %v398 = vld [vmem:[#allocation6 + $0x8e8] sm:$0xff]
    %v399 = vld [vmem:[#allocation6 + $0x8f0] sm:$0xff]
    %v400 = vld [vmem:[#allocation6 + $0x8f8] sm:$0xff]
    %v401 = vld [vmem:[#allocation6 + $0x900] sm:$0xff]
    %v402 = vld [vmem:[#allocation6 + $0x908] sm:$0xff]
    %v403 = vld [vmem:[#allocation6 + $0x910] sm:$0xff]
    %v404 = vld [vmem:[#allocation6 + $0x918] sm:$0xff]
    %v405 = vld [vmem:[#allocation6 + $0x920] sm:$0xff]
    %v406 = vld [vmem:[#allocation6 + $0x928] sm:$0xff]
    %v407 = vld [vmem:[#allocation6 + $0x930] sm:$0xff]
    %v408 = vld [vmem:[#allocation6 + $0x938] sm:$0xff]
    %v409 = vld [vmem:[#allocation6 + $0x940] sm:$0xff]
    %v410 = vld [vmem:[#allocation6 + $0x948] sm:$0xff]
    %v411 = vld [vmem:[#allocation6 + $0x950] sm:$0xff]
    %v412 = vld [vmem:[#allocation6 + $0x958] sm:$0xff]
    %v413 = vld [vmem:[#allocation6 + $0x960] sm:$0xff]
    %v414 = vld [vmem:[#allocation6 + $0x968] sm:$0xff]
    %v415 = vld [vmem:[#allocation6 + $0x970] sm:$0xff]
    %v416 = vld [vmem:[#allocation6 + $0x978] sm:$0xff]
    %v417 = vld [vmem:[#allocation6 + $0x980] sm:$0xff]
    %v418 = vld [vmem:[#allocation6 + $0x988] sm:$0xff]
    %v419 = vld [vmem:[#allocation6 + $0x990] sm:$0xff]
    %v420 = vld [vmem:[#allocation6 + $0x998] sm:$0xff]
    %v421 = vld [vmem:[#allocation6 + $0x9a0] sm:$0xff]
    %v422 = vld [vmem:[#allocation6 + $0x9a8] sm:$0xff]
    %v423 = vld [vmem:[#allocation6 + $0x9b0] sm:$0xff]
    %v424 = vld [vmem:[#allocation6 + $0x9b8] sm:$0xff]
    %v425 = vld [vmem:[#allocation6 + $0x9c0] sm:$0xff]
    %v426 = vld [vmem:[#allocation6 + $0x9c8] sm:$0xff]
    %v427 = vld [vmem:[#allocation6 + $0x9d0] sm:$0xff]
    %v428 = vld [vmem:[#allocation6 + $0x9d8] sm:$0xff]
    %v429 = vld [vmem:[#allocation6 + $0x9e0] sm:$0xff]
    %v430 = vld [vmem:[#allocation6 + $0x9e8] sm:$0xff]
    %v431 = vld [vmem:[#allocation6 + $0x9f0] sm:$0xff]
    %v432 = vld [vmem:[#allocation6 + $0x9f8] sm:$0xff]
    %v433 = vld [vmem:[#allocation6 + $0xa00] sm:$0xff]
    %v434 = vld [vmem:[#allocation6 + $0xa08] sm:$0xff]
    %v435 = vld [vmem:[#allocation6 + $0xa10] sm:$0xff]
    %v436 = vld [vmem:[#allocation6 + $0xa18] sm:$0xff]
    %v437 = vld [vmem:[#allocation6 + $0xa20] sm:$0xff]
    %v438 = vld [vmem:[#allocation6 + $0xa28] sm:$0xff]
    %v439 = vld [vmem:[#allocation6 + $0xa30] sm:$0xff]
    %v440 = vld [vmem:[#allocation6 + $0xa38] sm:$0xff]
    %v441 = vld [vmem:[#allocation6 + $0xa40] sm:$0xff]
    %v442 = vld [vmem:[#allocation6 + $0xa48] sm:$0xff]
    %v443 = vld [vmem:[#allocation6 + $0xa50] sm:$0xff]
    %v444 = vld [vmem:[#allocation6 + $0xa58] sm:$0xff]
    %v445 = vld [vmem:[#allocation6 + $0xa60] sm:$0xff]
    %v446 = vld [vmem:[#allocation6 + $0xa68] sm:$0xff]
    %v447 = vld [vmem:[#allocation6 + $0xa70] sm:$0xff]
    %v448 = vld [vmem:[#allocation6 + $0xa78] sm:$0xff]
    %v449 = vld [vmem:[#allocation6 + $0xa80] sm:$0xff]
    %v450 = vld [vmem:[#allocation6 + $0xa88] sm:$0xff]
    %v451 = vld [vmem:[#allocation6 + $0xa90] sm:$0xff]
    %v452 = vld [vmem:[#allocation6 + $0xa98] sm:$0xff]
    %v453 = vld [vmem:[#allocation6 + $0xaa0] sm:$0xff]
    %v454 = vld [vmem:[#allocation6 + $0xaa8] sm:$0xff]
    %v455 = vld [vmem:[#allocation6 + $0xab0] sm:$0xff]
    %v456 = vld [vmem:[#allocation6 + $0xab8] sm:$0xff]
    %v457 = vld [vmem:[#allocation6 + $0xac0] sm:$0xff]
    %v458 = vld [vmem:[#allocation6 + $0xac8] sm:$0xff]
    %v459 = vld [vmem:[#allocation6 + $0xad0] sm:$0xff]
    %v460 = vld [vmem:[#allocation6 + $0xad8] sm:$0xff]
    %v461 = vld [vmem:[#allocation6 + $0xae0] sm:$0xff]
    %v462 = vld [vmem:[#allocation6 + $0xae8] sm:$0xff]
    %v463 = vld [vmem:[#allocation6 + $0xaf0] sm:$0xff]
    %v464 = vld [vmem:[#allocation6 + $0xaf8] sm:$0xff]
    %v465 = vld [vmem:[#allocation6 + $0xb00] sm:$0xff]
    %v466 = vld [vmem:[#allocation6 + $0xb08] sm:$0xff]
    %v467 = vld [vmem:[#allocation6 + $0xb10] sm:$0xff]
    %v468 = vld [vmem:[#allocation6 + $0xb18] sm:$0xff]
    %v469 = vld [vmem:[#allocation6 + $0xb20] sm:$0xff]
    %v470 = vld [vmem:[#allocation6 + $0xb28] sm:$0xff]
    %v471 = vld [vmem:[#allocation6 + $0xb30] sm:$0xff]
    %v472 = vld [vmem:[#allocation6 + $0xb38] sm:$0xff]
    %v473 = vld [vmem:[#allocation6 + $0xb40] sm:$0xff]
    %v474 = vld [vmem:[#allocation6 + $0xb48] sm:$0xff]
    %v475 = vld [vmem:[#allocation6 + $0xb50] sm:$0xff]
    %v476 = vld [vmem:[#allocation6 + $0xb58] sm:$0xff]
    %v477 = vld [vmem:[#allocation6 + $0xb60] sm:$0xff]
    %v478 = vld [vmem:[#allocation6 + $0xb68] sm:$0xff]
    %v479 = vld [vmem:[#allocation6 + $0xb70] sm:$0xff]
    %v480 = vld [vmem:[#allocation6 + $0xb78] sm:$0xff]
    %v481 = vld [vmem:[#allocation6 + $0xb80] sm:$0xff]
    %v482 = vld [vmem:[#allocation6 + $0xb88] sm:$0xff]
    %v483 = vld [vmem:[#allocation6 + $0xb90] sm:$0xff]
    %v484 = vld [vmem:[#allocation6 + $0xb98] sm:$0xff]
    %v485 = vld [vmem:[#allocation6 + $0xba0] sm:$0xff]
    %v486 = vld [vmem:[#allocation6 + $0xba8] sm:$0xff]
    %v487 = vld [vmem:[#allocation6 + $0xbb0] sm:$0xff]
    %v488 = vld [vmem:[#allocation6 + $0xbb8] sm:$0xff]
    %v489 = vld [vmem:[#allocation6 + $0xbc0] sm:$0xff]
    %v490 = vld [vmem:[#allocation6 + $0xbc8] sm:$0xff]
    %v491 = vld [vmem:[#allocation6 + $0xbd0] sm:$0xff]
    %v492 = vld [vmem:[#allocation6 + $0xbd8] sm:$0xff]
    %v493 = vld [vmem:[#allocation6 + $0xbe0] sm:$0xff]
    %v494 = vld [vmem:[#allocation6 + $0xbe8] sm:$0xff]
    %v495 = vld [vmem:[#allocation6 + $0xbf0] sm:$0xff]
    %v496 = vld [vmem:[#allocation6 + $0xbf8] sm:$0xff]
    %v497 = vld [vmem:[#allocation6 + $0xc00] sm:$0xff]
    %v498 = vld [vmem:[#allocation6 + $0xc08] sm:$0xff]
    %v499 = vld [vmem:[#allocation6 + $0xc10] sm:$0xff]
    %v500 = vld [vmem:[#allocation6 + $0xc18] sm:$0xff]
    %v501 = vld [vmem:[#allocation6 + $0xc20] sm:$0xff]
    %v502 = vld [vmem:[#allocation6 + $0xc28] sm:$0xff]
    %v503 = vld [vmem:[#allocation6 + $0xc30] sm:$0xff]
    %v504 = vld [vmem:[#allocation6 + $0xc38] sm:$0xff]
    %v505 = vld [vmem:[#allocation6 + $0xc40] sm:$0xff]
    %v506 = vld [vmem:[#allocation6 + $0xc48] sm:$0xff]
    %v507 = vld [vmem:[#allocation6 + $0xc50] sm:$0xff]
    %v508 = vld [vmem:[#allocation6 + $0xc58] sm:$0xff]
    %v509 = vld [vmem:[#allocation6 + $0xc60] sm:$0xff]
    %v510 = vld [vmem:[#allocation6 + $0xc68] sm:$0xff]
    %v511 = vld [vmem:[#allocation6 + $0xc70] sm:$0xff]
    %v512 = vld [vmem:[#allocation6 + $0xc78] sm:$0xff]
    %v513 = vld [vmem:[#allocation6 + $0xc80] sm:$0xff]
    %v514 = vld [vmem:[#allocation6 + $0xc88] sm:$0xff]
    %v515 = vld [vmem:[#allocation6 + $0xc90] sm:$0xff]
    %v516 = vld [vmem:[#allocation6 + $0xc98] sm:$0xff]
    %v517 = vld [vmem:[#allocation6 + $0xca0] sm:$0xff]
    %v518 = vld [vmem:[#allocation6 + $0xca8] sm:$0xff]
    %v519 = vld [vmem:[#allocation6 + $0xcb0] sm:$0xff]
    %v520 = vld [vmem:[#allocation6 + $0xcb8] sm:$0xff]
    %v521 = vld [vmem:[#allocation6 + $0xcc0] sm:$0xff]
    %v522 = vld [vmem:[#allocation6 + $0xcc8] sm:$0xff]
    %v523 = vld [vmem:[#allocation6 + $0xcd0] sm:$0xff]
    %v524 = vld [vmem:[#allocation6 + $0xcd8] sm:$0xff]
    %v525 = vld [vmem:[#allocation6 + $0xce0] sm:$0xff]
    %v526 = vld [vmem:[#allocation6 + $0xce8] sm:$0xff]
    %v527 = vld [vmem:[#allocation6 + $0xcf0] sm:$0xff]
    %v528 = vld [vmem:[#allocation6 + $0xcf8] sm:$0xff]
    %v529 = vld [vmem:[#allocation6 + $0xd00] sm:$0xff]
    %v530 = vld [vmem:[#allocation6 + $0xd08] sm:$0xff]
    %v531 = vld [vmem:[#allocation6 + $0xd10] sm:$0xff]
    %v532 = vld [vmem:[#allocation6 + $0xd18] sm:$0xff]
    %v533 = vld [vmem:[#allocation6 + $0xd20] sm:$0xff]
    %v534 = vld [vmem:[#allocation6 + $0xd28] sm:$0xff]
    %v535 = vld [vmem:[#allocation6 + $0xd30] sm:$0xff]
    %v536 = vld [vmem:[#allocation6 + $0xd38] sm:$0xff]
    %v537 = vld [vmem:[#allocation6 + $0xd40] sm:$0xff]
    %v538 = vld [vmem:[#allocation6 + $0xd48] sm:$0xff]
    %v539 = vld [vmem:[#allocation6 + $0xd50] sm:$0xff]
    %v540 = vld [vmem:[#allocation6 + $0xd58] sm:$0xff]
    %v541 = vld [vmem:[#allocation6 + $0xd60] sm:$0xff]
    %v542 = vld [vmem:[#allocation6 + $0xd68] sm:$0xff]
    %v543 = vld [vmem:[#allocation6 + $0xd70] sm:$0xff]
    %v544 = vld [vmem:[#allocation6 + $0xd78] sm:$0xff]
    %v545 = vld [vmem:[#allocation6 + $0xd80] sm:$0xff]
    %v546 = vld [vmem:[#allocation6 + $0xd88] sm:$0xff]
    %v547 = vld [vmem:[#allocation6 + $0xd90] sm:$0xff]
    %v548 = vld [vmem:[#allocation6 + $0xd98] sm:$0xff]
    %v549 = vld [vmem:[#allocation6 + $0xda0] sm:$0xff]
    %v550 = vld [vmem:[#allocation6 + $0xda8] sm:$0xff]
    %v551 = vld [vmem:[#allocation6 + $0xdb0] sm:$0xff]
    %v552 = vld [vmem:[#allocation6 + $0xdb8] sm:$0xff]
    %v553 = vld [vmem:[#allocation6 + $0xdc0] sm:$0xff]
    %v554 = vld [vmem:[#allocation6 + $0xdc8] sm:$0xff]
    %v555 = vld [vmem:[#allocation6 + $0xdd0] sm:$0xff]
    %v556 = vld [vmem:[#allocation6 + $0xdd8] sm:$0xff]
    %v557 = vld [vmem:[#allocation6 + $0xde0] sm:$0xff]
    %v558 = vld [vmem:[#allocation6 + $0xde8] sm:$0xff]
    %v559 = vld [vmem:[#allocation6 + $0xdf0] sm:$0xff]
    %v560 = vld [vmem:[#allocation6 + $0xdf8] sm:$0xff]
    %v561 = vld [vmem:[#allocation6 + $0xe00] sm:$0xff]
    %v562 = vld [vmem:[#allocation6 + $0xe08] sm:$0xff]
    %v563 = vld [vmem:[#allocation6 + $0xe10] sm:$0xff]
    %v564 = vld [vmem:[#allocation6 + $0xe18] sm:$0xff]
    %v565 = vld [vmem:[#allocation6 + $0xe20] sm:$0xff]
    %v566 = vld [vmem:[#allocation6 + $0xe28] sm:$0xff]
    %v567 = vld [vmem:[#allocation6 + $0xe30] sm:$0xff]
    %v568 = vld [vmem:[#allocation6 + $0xe38] sm:$0xff]
    %v569 = vld [vmem:[#allocation6 + $0xe40] sm:$0xff]
    %v570 = vld [vmem:[#allocation6 + $0xe48] sm:$0xff]
    %v571 = vld [vmem:[#allocation6 + $0xe50] sm:$0xff]
    %v572 = vld [vmem:[#allocation6 + $0xe58] sm:$0xff]
    %v573 = vld [vmem:[#allocation6 + $0xe60] sm:$0xff]
    %v574 = vld [vmem:[#allocation6 + $0xe68] sm:$0xff]
    %v575 = vld [vmem:[#allocation6 + $0xe70] sm:$0xff]
    %v576 = vld [vmem:[#allocation6 + $0xe78] sm:$0xff]
    %v577 = vld [vmem:[#allocation6 + $0xe80] sm:$0xff]
    %v578 = vld [vmem:[#allocation6 + $0xe88] sm:$0xff]
    %v579 = vld [vmem:[#allocation6 + $0xe90] sm:$0xff]
    %v580 = vld [vmem:[#allocation6 + $0xe98] sm:$0xff]
    %v581 = vld [vmem:[#allocation6 + $0xea0] sm:$0xff]
    %v582 = vld [vmem:[#allocation6 + $0xea8] sm:$0xff]
    %v583 = vld [vmem:[#allocation6 + $0xeb0] sm:$0xff]
    %v584 = vld [vmem:[#allocation6 + $0xeb8] sm:$0xff]
    %v585 = vld [vmem:[#allocation6 + $0xec0] sm:$0xff]
    %v586 = vld [vmem:[#allocation6 + $0xec8] sm:$0xff]
    %v587 = vld [vmem:[#allocation6 + $0xed0] sm:$0xff]
    %v588 = vld [vmem:[#allocation6 + $0xed8] sm:$0xff]
    %v589 = vld [vmem:[#allocation6 + $0xee0] sm:$0xff]
    %v590 = vld [vmem:[#allocation6 + $0xee8] sm:$0xff]
    %v591 = vld [vmem:[#allocation6 + $0xef0] sm:$0xff]
    %v592 = vld [vmem:[#allocation6 + $0xef8] sm:$0xff]
    %v593 = vld [vmem:[#allocation6 + $0xf00] sm:$0xff]
    %v594 = vld [vmem:[#allocation6 + $0xf08] sm:$0xff]
    %v595 = vld [vmem:[#allocation6 + $0xf10] sm:$0xff]
    %v596 = vld [vmem:[#allocation6 + $0xf18] sm:$0xff]
    %v597 = vld [vmem:[#allocation6 + $0xf20] sm:$0xff]
    %v598 = vld [vmem:[#allocation6 + $0xf28] sm:$0xff]
    %v599 = vld [vmem:[#allocation6 + $0xf30] sm:$0xff]
    %v600 = vld [vmem:[#allocation6 + $0xf38] sm:$0xff]
    %v601 = vld [vmem:[#allocation6 + $0xf40] sm:$0xff]
    %v602 = vld [vmem:[#allocation6 + $0xf48] sm:$0xff]
    %v603 = vld [vmem:[#allocation6 + $0xf50] sm:$0xff]
    %v604 = vld [vmem:[#allocation6 + $0xf58] sm:$0xff]
    %v605 = vld [vmem:[#allocation6 + $0xf60] sm:$0xff]
    %v606 = vld [vmem:[#allocation6 + $0xf68] sm:$0xff]
    %v607 = vld [vmem:[#allocation6 + $0xf70] sm:$0xff]
    %v608 = vld [vmem:[#allocation6 + $0xf78] sm:$0xff]
    %v609 = vld [vmem:[#allocation6 + $0xf80] sm:$0xff]
    %v610 = vld [vmem:[#allocation6 + $0xf88] sm:$0xff]
    %v611 = vld [vmem:[#allocation6 + $0xf90] sm:$0xff]
    %v612 = vld [vmem:[#allocation6 + $0xf98] sm:$0xff]
    %v613 = vld [vmem:[#allocation6 + $0xfa0] sm:$0xff]
    %v614 = vld [vmem:[#allocation6 + $0xfa8] sm:$0xff]
    %v615 = vld [vmem:[#allocation6 + $0xfb0] sm:$0xff]
    %v616 = vld [vmem:[#allocation6 + $0xfb8] sm:$0xff]
    %v617 = vld [vmem:[#allocation6 + $0xfc0] sm:$0xff]
    %v618 = vld [vmem:[#allocation6 + $0xfc8] sm:$0xff]
    %v619 = vld [vmem:[#allocation6 + $0xfd0] sm:$0xff]
    %v620 = vld [vmem:[#allocation6 + $0xfd8] sm:$0xff]
    %v621 = vld [vmem:[#allocation6 + $0xfe0] sm:$0xff]
    %v622 = vld [vmem:[#allocation6 + $0xfe8] sm:$0xff]
    %v623 = vld [vmem:[#allocation6 + $0xff0] sm:$0xff]
    %v624 = vld [vmem:[#allocation6 + $0xff8] sm:$0xff]
    %v625 = vld [vmem:[#allocation7] sm:$0xf]
    %v627 = vlaneseq
    %v628 = vshrl.u32 %v627, 7
    %v629 = vsub.s32 0, %v628
    %v630 = vrot.slane %v625, %v629
    %v631 = vlaneseq
    %v632 = vshrl.u32 %v631, 7
    %v633 = vsub.s32 1, %v632
    %v634 = vrot.slane %v625, %v633
    %v635 = vlaneseq
    %v636 = vshrl.u32 %v635, 7
    %v637 = vsub.s32 2, %v636
    %v638 = vrot.slane %v625, %v637
    %v639 = vlaneseq
    %v640 = vshrl.u32 %v639, 7
    %v641 = vsub.s32 3, %v640
    %v642 = vrot.slane %v625, %v641
    %647 = vmatprep.subr.mxu0 %v114
    %648 = vmatpush1.msra.mxu0 %v113
    %649 = vmatprep.subr.mxu0 %v118
    %650 = vmatpush1.msra.mxu0 %v117
    %651 = vmatprep.subr.mxu0 %v122
    %652 = vmatpush1.msra.mxu0 %v121
    %653 = vmatprep.subr.mxu0 %v126
    %654 = vmatpush1.msra.mxu0 %v125
    %655 = vmatprep.subr.mxu0 %v130
    %656 = vmatpush1.msra.mxu0 %v129
    %657 = vmatprep.subr.mxu0 %v134
    %658 = vmatpush1.msra.mxu0 %v133
    %659 = vmatprep.subr.mxu0 %v138
    %660 = vmatpush1.msra.mxu0 %v137
    %661 = vmatprep.subr.mxu0 %v142
    %662 = vmatpush1.msra.mxu0 %v141
    %663 = vmatprep.subr.mxu0 %v146
    %664 = vmatpush1.msra.mxu0 %v145
    %665 = vmatprep.subr.mxu0 %v150
    %666 = vmatpush1.msra.mxu0 %v149
    %667 = vmatprep.subr.mxu0 %v154
    %668 = vmatpush1.msra.mxu0 %v153
    %669 = vmatprep.subr.mxu0 %v158
    %670 = vmatpush1.msra.mxu0 %v157
    %671 = vmatprep.subr.mxu0 %v162
    %672 = vmatpush1.msra.mxu0 %v161
    %673 = vmatprep.subr.mxu0 %v166
    %674 = vmatpush1.msra.mxu0 %v165
    %675 = vmatprep.subr.mxu0 %v170
    %676 = vmatpush1.msra.mxu0 %v169
    %677 = vmatprep.subr.mxu0 %v174
    %678 = vmatpush1.msra.mxu0 %v173
    %679 = vmatprep.subr.mxu0 %v178
    %680 = vmatpush1.msra.mxu0 %v177
    %681 = vmatprep.subr.mxu0 %v182
    %682 = vmatpush1.msra.mxu0 %v181
    %683 = vmatprep.subr.mxu0 %v186
    %684 = vmatpush1.msra.mxu0 %v185
    %685 = vmatprep.subr.mxu0 %v190
    %686 = vmatpush1.msra.mxu0 %v189
    %687 = vmatprep.subr.mxu0 %v194
    %688 = vmatpush1.msra.mxu0 %v193
    %689 = vmatprep.subr.mxu0 %v198
    %690 = vmatpush1.msra.mxu0 %v197
    %691 = vmatprep.subr.mxu0 %v202
    %692 = vmatpush1.msra.mxu0 %v201
    %693 = vmatprep.subr.mxu0 %v206
    %694 = vmatpush1.msra.mxu0 %v205
    %695 = vmatprep.subr.mxu0 %v210
    %696 = vmatpush1.msra.mxu0 %v209
    %697 = vmatprep.subr.mxu0 %v214
    %698 = vmatpush1.msra.mxu0 %v213
    %699 = vmatprep.subr.mxu0 %v218
    %700 = vmatpush1.msra.mxu0 %v217
    %701 = vmatprep.subr.mxu0 %v222
    %702 = vmatpush1.msra.mxu0 %v221
    %703 = vmatprep.subr.mxu0 %v226
    %704 = vmatpush1.msra.mxu0 %v225
    %705 = vmatprep.subr.mxu0 %v230
    %706 = vmatpush1.msra.mxu0 %v229
    %707 = vmatprep.subr.mxu0 %v234
    %708 = vmatpush1.msra.mxu0 %v233
    %709 = vmatprep.subr.mxu0 %v238
    %710 = vmatpush1.msra.mxu0 %v237
    %711 = vmatprep.mubr.f32.mxu0 %v106
    %712 = vmatmul.mubr.f32.gmra.mrb[0].mxu0 %v105
    %v713 = vpop.f32.mrb[0].mxu0
    %v714 = vadd.f32 %v630, %v713
    %v715 = vpop.f32.mrb[0].mxu0
    %v716 = vadd.f32 %v634, %v715
    %717 = vdwg.mxu0
    %718 = vmatprep.subr.mxu0 %v242
    %719 = vmatpush1.msra.mxu0 %v241
    %720 = vmatprep.subr.mxu0 %v246
    %721 = vmatpush1.msra.mxu0 %v245
    %722 = vmatprep.subr.mxu0 %v250
    %723 = vmatpush1.msra.mxu0 %v249
    %724 = vmatprep.subr.mxu0 %v254
    %725 = vmatpush1.msra.mxu0 %v253
    %726 = vmatprep.subr.mxu0 %v258
    %727 = vmatpush1.msra.mxu0 %v257
    %728 = vmatprep.subr.mxu0 %v262
    %729 = vmatpush1.msra.mxu0 %v261
    %730 = vmatprep.subr.mxu0 %v266
    %731 = vmatpush1.msra.mxu0 %v265
    %732 = vmatprep.subr.mxu0 %v270
    %733 = vmatpush1.msra.mxu0 %v269
    %734 = vmatprep.subr.mxu0 %v274
    %735 = vmatpush1.msra.mxu0 %v273
    %736 = vmatprep.subr.mxu0 %v278
    %737 = vmatpush1.msra.mxu0 %v277
    %738 = vmatprep.subr.mxu0 %v282
    %739 = vmatpush1.msra.mxu0 %v281
    %740 = vmatprep.subr.mxu0 %v286
    %741 = vmatpush1.msra.mxu0 %v285
    %742 = vmatprep.subr.mxu0 %v290
    %743 = vmatpush1.msra.mxu0 %v289
    %744 = vmatprep.subr.mxu0 %v294
    %745 = vmatpush1.msra.mxu0 %v293
    %746 = vmatprep.subr.mxu0 %v298
    %747 = vmatpush1.msra.mxu0 %v297
    %748 = vmatprep.subr.mxu0 %v302
    %749 = vmatpush1.msra.mxu0 %v301
    %750 = vmatprep.subr.mxu0 %v306
    %751 = vmatpush1.msra.mxu0 %v305
    %752 = vmatprep.subr.mxu0 %v310
    %753 = vmatpush1.msra.mxu0 %v309
    %754 = vmatprep.subr.mxu0 %v314
    %755 = vmatpush1.msra.mxu0 %v313
    %756 = vmatprep.subr.mxu0 %v318
    %757 = vmatpush1.msra.mxu0 %v317
    %758 = vmatprep.subr.mxu0 %v322
    %759 = vmatpush1.msra.mxu0 %v321
    %760 = vmatprep.subr.mxu0 %v326
    %761 = vmatpush1.msra.mxu0 %v325
    %762 = vmatprep.subr.mxu0 %v330
    %763 = vmatpush1.msra.mxu0 %v329
    %764 = vmatprep.subr.mxu0 %v334
    %765 = vmatpush1.msra.mxu0 %v333
    %766 = vmatprep.subr.mxu0 %v338
    %767 = vmatpush1.msra.mxu0 %v337
    %768 = vmatprep.subr.mxu0 %v342
    %769 = vmatpush1.msra.mxu0 %v341
    %770 = vmatprep.subr.mxu0 %v346
    %771 = vmatpush1.msra.mxu0 %v345
    %772 = vmatprep.subr.mxu0 %v350
    %773 = vmatpush1.msra.mxu0 %v349
    %774 = vmatprep.subr.mxu0 %v354
    %775 = vmatpush1.msra.mxu0 %v353
    %776 = vmatprep.subr.mxu0 %v358
    %777 = vmatpush1.msra.mxu0 %v357
    %778 = vmatprep.subr.mxu0 %v362
    %779 = vmatpush1.msra.mxu0 %v361
    %780 = vmatprep.subr.mxu0 %v366
    %781 = vmatpush1.msra.mxu0 %v365
    %782 = vmatprep.mubr.f32.mxu0 %v108
    %783 = vmatmul.mubr.f32.gmra.mrb[0].mxu0 %v107
    %v784 = vpop.f32.mrb[0].mxu0
    %v785 = vadd.f32 %v714, %v784
    %v786 = vpop.f32.mrb[0].mxu0
    %v787 = vadd.f32 %v716, %v786
    %788 = vdwg.mxu0
    %789 = vmatprep.subr.mxu0 %v370
    %790 = vmatpush1.msra.mxu0 %v369
    %791 = vmatprep.subr.mxu0 %v374
    %792 = vmatpush1.msra.mxu0 %v373
    %793 = vmatprep.subr.mxu0 %v378
    %794 = vmatpush1.msra.mxu0 %v377
    %795 = vmatprep.subr.mxu0 %v382
    %796 = vmatpush1.msra.mxu0 %v381
    %797 = vmatprep.subr.mxu0 %v386
    %798 = vmatpush1.msra.mxu0 %v385
    %799 = vmatprep.subr.mxu0 %v390
    %800 = vmatpush1.msra.mxu0 %v389
    %801 = vmatprep.subr.mxu0 %v394
    %802 = vmatpush1.msra.mxu0 %v393
    %803 = vmatprep.subr.mxu0 %v398
    %804 = vmatpush1.msra.mxu0 %v397
    %805 = vmatprep.subr.mxu0 %v402
    %806 = vmatpush1.msra.mxu0 %v401
    %807 = vmatprep.subr.mxu0 %v406
    %808 = vmatpush1.msra.mxu0 %v405
    %809 = vmatprep.subr.mxu0 %v410
    %810 = vmatpush1.msra.mxu0 %v409
    %811 = vmatprep.subr.mxu0 %v414
    %812 = vmatpush1.msra.mxu0 %v413
    %813 = vmatprep.subr.mxu0 %v418
    %814 = vmatpush1.msra.mxu0 %v417
    %815 = vmatprep.subr.mxu0 %v422
    %816 = vmatpush1.msra.mxu0 %v421
    %817 = vmatprep.subr.mxu0 %v426
    %818 = vmatpush1.msra.mxu0 %v425
    %819 = vmatprep.subr.mxu0 %v430
    %820 = vmatpush1.msra.mxu0 %v429
    %821 = vmatprep.subr.mxu0 %v434
    %822 = vmatpush1.msra.mxu0 %v433
    %823 = vmatprep.subr.mxu0 %v438
    %824 = vmatpush1.msra.mxu0 %v437
    %825 = vmatprep.subr.mxu0 %v442
    %826 = vmatpush1.msra.mxu0 %v441
    %827 = vmatprep.subr.mxu0 %v446
    %828 = vmatpush1.msra.mxu0 %v445
    %829 = vmatprep.subr.mxu0 %v450
    %830 = vmatpush1.msra.mxu0 %v449
    %831 = vmatprep.subr.mxu0 %v454
    %832 = vmatpush1.msra.mxu0 %v453
    %833 = vmatprep.subr.mxu0 %v458
    %834 = vmatpush1.msra.mxu0 %v457
    %835 = vmatprep.subr.mxu0 %v462
    %836 = vmatpush1.msra.mxu0 %v461
    %837 = vmatprep.subr.mxu0 %v466
    %838 = vmatpush1.msra.mxu0 %v465
    %839 = vmatprep.subr.mxu0 %v470
    %840 = vmatpush1.msra.mxu0 %v469
    %841 = vmatprep.subr.mxu0 %v474
    %842 = vmatpush1.msra.mxu0 %v473
    %843 = vmatprep.subr.mxu0 %v478
    %844 = vmatpush1.msra.mxu0 %v477
    %845 = vmatprep.subr.mxu0 %v482
    %846 = vmatpush1.msra.mxu0 %v481
    %847 = vmatprep.subr.mxu0 %v486
    %848 = vmatpush1.msra.mxu0 %v485
    %849 = vmatprep.subr.mxu0 %v490
    %850 = vmatpush1.msra.mxu0 %v489
    %851 = vmatprep.subr.mxu0 %v494
    %852 = vmatpush1.msra.mxu0 %v493
    %853 = vmatprep.mubr.f32.mxu0 %v110
    %854 = vmatmul.mubr.f32.gmra.mrb[0].mxu0 %v109
    %v855 = vpop.f32.mrb[0].mxu0
    %v856 = vadd.f32 %v785, %v855
    %v857 = vpop.f32.mrb[0].mxu0
    %v858 = vadd.f32 %v787, %v857
    %859 = vdwg.mxu0
    %860 = vmatprep.subr.mxu0 %v498
    %861 = vmatpush1.msra.mxu0 %v497
    %862 = vmatprep.subr.mxu0 %v502
    %863 = vmatpush1.msra.mxu0 %v501
    %864 = vmatprep.subr.mxu0 %v506
    %865 = vmatpush1.msra.mxu0 %v505
    %866 = vmatprep.subr.mxu0 %v510
    %867 = vmatpush1.msra.mxu0 %v509
    %868 = vmatprep.subr.mxu0 %v514
    %869 = vmatpush1.msra.mxu0 %v513
    %870 = vmatprep.subr.mxu0 %v518
    %871 = vmatpush1.msra.mxu0 %v517
    %872 = vmatprep.subr.mxu0 %v522
    %873 = vmatpush1.msra.mxu0 %v521
    %874 = vmatprep.subr.mxu0 %v526
    %875 = vmatpush1.msra.mxu0 %v525
    %876 = vmatprep.subr.mxu0 %v530
    %877 = vmatpush1.msra.mxu0 %v529
    %878 = vmatprep.subr.mxu0 %v534
    %879 = vmatpush1.msra.mxu0 %v533
    %880 = vmatprep.subr.mxu0 %v538
    %881 = vmatpush1.msra.mxu0 %v537
    %882 = vmatprep.subr.mxu0 %v542
    %883 = vmatpush1.msra.mxu0 %v541
    %884 = vmatprep.subr.mxu0 %v546
    %885 = vmatpush1.msra.mxu0 %v545
    %886 = vmatprep.subr.mxu0 %v550
    %887 = vmatpush1.msra.mxu0 %v549
    %888 = vmatprep.subr.mxu0 %v554
    %889 = vmatpush1.msra.mxu0 %v553
    %890 = vmatprep.subr.mxu0 %v558
    %891 = vmatpush1.msra.mxu0 %v557
    %892 = vmatprep.subr.mxu0 %v562
    %893 = vmatpush1.msra.mxu0 %v561
    %894 = vmatprep.subr.mxu0 %v566
    %895 = vmatpush1.msra.mxu0 %v565
    %896 = vmatprep.subr.mxu0 %v570
    %897 = vmatpush1.msra.mxu0 %v569
    %898 = vmatprep.subr.mxu0 %v574
    %899 = vmatpush1.msra.mxu0 %v573
    %900 = vmatprep.subr.mxu0 %v578
    %901 = vmatpush1.msra.mxu0 %v577
    %902 = vmatprep.subr.mxu0 %v582
    %903 = vmatpush1.msra.mxu0 %v581
    %904 = vmatprep.subr.mxu0 %v586
    %905 = vmatpush1.msra.mxu0 %v585
    %906 = vmatprep.subr.mxu0 %v590
    %907 = vmatpush1.msra.mxu0 %v589
    %908 = vmatprep.subr.mxu0 %v594
    %909 = vmatpush1.msra.mxu0 %v593
    %910 = vmatprep.subr.mxu0 %v598
    %911 = vmatpush1.msra.mxu0 %v597
    %912 = vmatprep.subr.mxu0 %v602
    %913 = vmatpush1.msra.mxu0 %v601
    %914 = vmatprep.subr.mxu0 %v606
    %915 = vmatpush1.msra.mxu0 %v605
    %916 = vmatprep.subr.mxu0 %v610
    %917 = vmatpush1.msra.mxu0 %v609
    %918 = vmatprep.subr.mxu0 %v614
    %919 = vmatpush1.msra.mxu0 %v613
    %920 = vmatprep.subr.mxu0 %v618
    %921 = vmatpush1.msra.mxu0 %v617
    %922 = vmatprep.subr.mxu0 %v622
    %923 = vmatpush1.msra.mxu0 %v621
    %924 = vmatprep.mubr.f32.mxu0 %v112
    %925 = vmatmul.mubr.f32.gmra.mrb[0].mxu0 %v111
    %v926 = vpop.f32.mrb[0].mxu0
    %v927 = vadd.f32 %v856, %v926
    %v928 = vpop.f32.mrb[0].mxu0
    %v929 = vadd.f32 %v858, %v928
    %930 = vdwg.mxu0
    %931 = vmatprep.subr.mxu0 %v116
    %932 = vmatpush1.msra.mxu0 %v115
    %933 = vmatprep.subr.mxu0 %v120
    %934 = vmatpush1.msra.mxu0 %v119
    %935 = vmatprep.subr.mxu0 %v124
    %936 = vmatpush1.msra.mxu0 %v123
    %937 = vmatprep.subr.mxu0 %v128
    %938 = vmatpush1.msra.mxu0 %v127
    %939 = vmatprep.subr.mxu0 %v132
    %940 = vmatpush1.msra.mxu0 %v131
    %941 = vmatprep.subr.mxu0 %v136
    %942 = vmatpush1.msra.mxu0 %v135
    %943 = vmatprep.subr.mxu0 %v140
    %944 = vmatpush1.msra.mxu0 %v139
    %945 = vmatprep.subr.mxu0 %v144
    %946 = vmatpush1.msra.mxu0 %v143
    %947 = vmatprep.subr.mxu0 %v148
    %948 = vmatpush1.msra.mxu0 %v147
    %949 = vmatprep.subr.mxu0 %v152
    %950 = vmatpush1.msra.mxu0 %v151
    %951 = vmatprep.subr.mxu0 %v156
    %952 = vmatpush1.msra.mxu0 %v155
    %953 = vmatprep.subr.mxu0 %v160
    %954 = vmatpush1.msra.mxu0 %v159
    %955 = vmatprep.subr.mxu0 %v164
    %956 = vmatpush1.msra.mxu0 %v163
    %957 = vmatprep.subr.mxu0 %v168
    %958 = vmatpush1.msra.mxu0 %v167
    %959 = vmatprep.subr.mxu0 %v172
    %960 = vmatpush1.msra.mxu0 %v171
    %961 = vmatprep.subr.mxu0 %v176
    %962 = vmatpush1.msra.mxu0 %v175
    %963 = vmatprep.subr.mxu0 %v180
    %964 = vmatpush1.msra.mxu0 %v179
    %965 = vmatprep.subr.mxu0 %v184
    %966 = vmatpush1.msra.mxu0 %v183
    %967 = vmatprep.subr.mxu0 %v188
    %968 = vmatpush1.msra.mxu0 %v187
    %969 = vmatprep.subr.mxu0 %v192
    %970 = vmatpush1.msra.mxu0 %v191
    %971 = vmatprep.subr.mxu0 %v196
    %972 = vmatpush1.msra.mxu0 %v195
    %973 = vmatprep.subr.mxu0 %v200
    %974 = vmatpush1.msra.mxu0 %v199
    %975 = vmatprep.subr.mxu0 %v204
    %976 = vmatpush1.msra.mxu0 %v203
    %977 = vmatprep.subr.mxu0 %v208
    %978 = vmatpush1.msra.mxu0 %v207
    %979 = vmatprep.subr.mxu0 %v212
    %980 = vmatpush1.msra.mxu0 %v211
    %981 = vmatprep.subr.mxu0 %v216
    %982 = vmatpush1.msra.mxu0 %v215
    %983 = vmatprep.subr.mxu0 %v220
    %984 = vmatpush1.msra.mxu0 %v219
    %985 = vmatprep.subr.mxu0 %v224
    %986 = vmatpush1.msra.mxu0 %v223
    %987 = vmatprep.subr.mxu0 %v228
    %988 = vmatpush1.msra.mxu0 %v227
    %989 = vmatprep.subr.mxu0 %v232
    %990 = vmatpush1.msra.mxu0 %v231
    %991 = vmatprep.subr.mxu0 %v236
    %992 = vmatpush1.msra.mxu0 %v235
    %993 = vmatprep.subr.mxu0 %v240
    %994 = vmatpush1.msra.mxu0 %v239
    %995 = vmatprep.mubr.f32.mxu0 %v106
    %996 = vmatmul.mubr.f32.gmra.mrb[0].mxu0 %v105
    %v997 = vpop.f32.mrb[0].mxu0
    %v998 = vadd.f32 %v638, %v997
    %v999 = vpop.f32.mrb[0].mxu0
    %v1000 = vadd.f32 %v642, %v999
    %1001 = vdwg.mxu0
    %1002 = vmatprep.subr.mxu0 %v244
    %1003 = vmatpush1.msra.mxu0 %v243
    %1004 = vmatprep.subr.mxu0 %v248
    %1005 = vmatpush1.msra.mxu0 %v247
    %1006 = vmatprep.subr.mxu0 %v252
    %1007 = vmatpush1.msra.mxu0 %v251
    %1008 = vmatprep.subr.mxu0 %v256
    %1009 = vmatpush1.msra.mxu0 %v255
    %1010 = vmatprep.subr.mxu0 %v260
    %1011 = vmatpush1.msra.mxu0 %v259
    %1012 = vmatprep.subr.mxu0 %v264
    %1013 = vmatpush1.msra.mxu0 %v263
    %1014 = vmatprep.subr.mxu0 %v268
    %1015 = vmatpush1.msra.mxu0 %v267
    %1016 = vmatprep.subr.mxu0 %v272
    %1017 = vmatpush1.msra.mxu0 %v271
    %1018 = vmatprep.subr.mxu0 %v276
    %1019 = vmatpush1.msra.mxu0 %v275
    %1020 = vmatprep.subr.mxu0 %v280
    %1021 = vmatpush1.msra.mxu0 %v279
    %1022 = vmatprep.subr.mxu0 %v284
    %1023 = vmatpush1.msra.mxu0 %v283
    %1024 = vmatprep.subr.mxu0 %v288
    %1025 = vmatpush1.msra.mxu0 %v287
    %1026 = vmatprep.subr.mxu0 %v292
    %1027 = vmatpush1.msra.mxu0 %v291
    %1028 = vmatprep.subr.mxu0 %v296
    %1029 = vmatpush1.msra.mxu0 %v295
    %1030 = vmatprep.subr.mxu0 %v300
    %1031 = vmatpush1.msra.mxu0 %v299
    %1032 = vmatprep.subr.mxu0 %v304
    %1033 = vmatpush1.msra.mxu0 %v303
    %1034 = vmatprep.subr.mxu0 %v308
    %1035 = vmatpush1.msra.mxu0 %v307
    %1036 = vmatprep.subr.mxu0 %v312
    %1037 = vmatpush1.msra.mxu0 %v311
    %1038 = vmatprep.subr.mxu0 %v316
    %1039 = vmatpush1.msra.mxu0 %v315
    %1040 = vmatprep.subr.mxu0 %v320
    %1041 = vmatpush1.msra.mxu0 %v319
    %1042 = vmatprep.subr.mxu0 %v324
    %1043 = vmatpush1.msra.mxu0 %v323
    %1044 = vmatprep.subr.mxu0 %v328
    %1045 = vmatpush1.msra.mxu0 %v327
    %1046 = vmatprep.subr.mxu0 %v332
    %1047 = vmatpush1.msra.mxu0 %v331
    %1048 = vmatprep.subr.mxu0 %v336
    %1049 = vmatpush1.msra.mxu0 %v335
    %1050 = vmatprep.subr.mxu0 %v340
    %1051 = vmatpush1.msra.mxu0 %v339
    %1052 = vmatprep.subr.mxu0 %v344
    %1053 = vmatpush1.msra.mxu0 %v343
    %1054 = vmatprep.subr.mxu0 %v348
    %1055 = vmatpush1.msra.mxu0 %v347
    %1056 = vmatprep.subr.mxu0 %v352
    %1057 = vmatpush1.msra.mxu0 %v351
    %1058 = vmatprep.subr.mxu0 %v356
    %1059 = vmatpush1.msra.mxu0 %v355
    %1060 = vmatprep.subr.mxu0 %v360
    %1061 = vmatpush1.msra.mxu0 %v359
    %1062 = vmatprep.subr.mxu0 %v364
    %1063 = vmatpush1.msra.mxu0 %v363
    %1064 = vmatprep.subr.mxu0 %v368
    %1065 = vmatpush1.msra.mxu0 %v367
    %1066 = vmatprep.mubr.f32.mxu0 %v108
    %1067 = vmatmul.mubr.f32.gmra.mrb[0].mxu0 %v107
    %v1068 = vpop.f32.mrb[0].mxu0
    %v1069 = vadd.f32 %v998, %v1068
    %v1070 = vpop.f32.mrb[0].mxu0
    %v1071 = vadd.f32 %v1000, %v1070
    %1072 = vdwg.mxu0
    %1073 = vmatprep.subr.mxu0 %v372
    %1074 = vmatpush1.msra.mxu0 %v371
    %1075 = vmatprep.subr.mxu0 %v376
    %1076 = vmatpush1.msra.mxu0 %v375
    %1077 = vmatprep.subr.mxu0 %v380
    %1078 = vmatpush1.msra.mxu0 %v379
    %1079 = vmatprep.subr.mxu0 %v384
    %1080 = vmatpush1.msra.mxu0 %v383
    %1081 = vmatprep.subr.mxu0 %v388
    %1082 = vmatpush1.msra.mxu0 %v387
    %1083 = vmatprep.subr.mxu0 %v392
    %1084 = vmatpush1.msra.mxu0 %v391
    %1085 = vmatprep.subr.mxu0 %v396
    %1086 = vmatpush1.msra.mxu0 %v395
    %1087 = vmatprep.subr.mxu0 %v400
    %1088 = vmatpush1.msra.mxu0 %v399
    %1089 = vmatprep.subr.mxu0 %v404
    %1090 = vmatpush1.msra.mxu0 %v403
    %1091 = vmatprep.subr.mxu0 %v408
    %1092 = vmatpush1.msra.mxu0 %v407
    %1093 = vmatprep.subr.mxu0 %v412
    %1094 = vmatpush1.msra.mxu0 %v411
    %1095 = vmatprep.subr.mxu0 %v416
    %1096 = vmatpush1.msra.mxu0 %v415
    %1097 = vmatprep.subr.mxu0 %v420
    %1098 = vmatpush1.msra.mxu0 %v419
    %1099 = vmatprep.subr.mxu0 %v424
    %1100 = vmatpush1.msra.mxu0 %v423
    %1101 = vmatprep.subr.mxu0 %v428
    %1102 = vmatpush1.msra.mxu0 %v427
    %1103 = vmatprep.subr.mxu0 %v432
    %1104 = vmatpush1.msra.mxu0 %v431
    %1105 = vmatprep.subr.mxu0 %v436
    %1106 = vmatpush1.msra.mxu0 %v435
    %1107 = vmatprep.subr.mxu0 %v440
    %1108 = vmatpush1.msra.mxu0 %v439
    %1109 = vmatprep.subr.mxu0 %v444
    %1110 = vmatpush1.msra.mxu0 %v443
    %1111 = vmatprep.subr.mxu0 %v448
    %1112 = vmatpush1.msra.mxu0 %v447
    %1113 = vmatprep.subr.mxu0 %v452
    %1114 = vmatpush1.msra.mxu0 %v451
    %1115 = vmatprep.subr.mxu0 %v456
    %1116 = vmatpush1.msra.mxu0 %v455
    %1117 = vmatprep.subr.mxu0 %v460
    %1118 = vmatpush1.msra.mxu0 %v459
    %1119 = vmatprep.subr.mxu0 %v464
    %1120 = vmatpush1.msra.mxu0 %v463
    %1121 = vmatprep.subr.mxu0 %v468
    %1122 = vmatpush1.msra.mxu0 %v467
    %1123 = vmatprep.subr.mxu0 %v472
    %1124 = vmatpush1.msra.mxu0 %v471
    %1125 = vmatprep.subr.mxu0 %v476
    %1126 = vmatpush1.msra.mxu0 %v475
    %1127 = vmatprep.subr.mxu0 %v480
    %1128 = vmatpush1.msra.mxu0 %v479
    %1129 = vmatprep.subr.mxu0 %v484
    %1130 = vmatpush1.msra.mxu0 %v483
    %1131 = vmatprep.subr.mxu0 %v488
    %1132 = vmatpush1.msra.mxu0 %v487
    %1133 = vmatprep.subr.mxu0 %v492
    %1134 = vmatpush1.msra.mxu0 %v491
    %1135 = vmatprep.subr.mxu0 %v496
    %1136 = vmatpush1.msra.mxu0 %v495
    %1137 = vmatprep.mubr.f32.mxu0 %v110
    %1138 = vmatmul.mubr.f32.gmra.mrb[0].mxu0 %v109
    %v1139 = vpop.f32.mrb[0].mxu0
    %v1140 = vadd.f32 %v1069, %v1139
    %v1141 = vpop.f32.mrb[0].mxu0
    %v1142 = vadd.f32 %v1071, %v1141
    %1143 = vdwg.mxu0
    %1144 = vmatprep.subr.mxu0 %v500
    %1145 = vmatpush1.msra.mxu0 %v499
    %1146 = vmatprep.subr.mxu0 %v504
    %1147 = vmatpush1.msra.mxu0 %v503
    %1148 = vmatprep.subr.mxu0 %v508
    %1149 = vmatpush1.msra.mxu0 %v507
    %1150 = vmatprep.subr.mxu0 %v512
    %1151 = vmatpush1.msra.mxu0 %v511
    %1152 = vmatprep.subr.mxu0 %v516
    %1153 = vmatpush1.msra.mxu0 %v515
    %1154 = vmatprep.subr.mxu0 %v520
    %1155 = vmatpush1.msra.mxu0 %v519
    %1156 = vmatprep.subr.mxu0 %v524
    %1157 = vmatpush1.msra.mxu0 %v523
    %1158 = vmatprep.subr.mxu0 %v528
    %1159 = vmatpush1.msra.mxu0 %v527
    %1160 = vmatprep.subr.mxu0 %v532
    %1161 = vmatpush1.msra.mxu0 %v531
    %1162 = vmatprep.subr.mxu0 %v536
    %1163 = vmatpush1.msra.mxu0 %v535
    %1164 = vmatprep.subr.mxu0 %v540
    %1165 = vmatpush1.msra.mxu0 %v539
    %1166 = vmatprep.subr.mxu0 %v544
    %1167 = vmatpush1.msra.mxu0 %v543
    %1168 = vmatprep.subr.mxu0 %v548
    %1169 = vmatpush1.msra.mxu0 %v547
    %1170 = vmatprep.subr.mxu0 %v552
    %1171 = vmatpush1.msra.mxu0 %v551
    %1172 = vmatprep.subr.mxu0 %v556
    %1173 = vmatpush1.msra.mxu0 %v555
    %1174 = vmatprep.subr.mxu0 %v560
    %1175 = vmatpush1.msra.mxu0 %v559
    %1176 = vmatprep.subr.mxu0 %v564
    %1177 = vmatpush1.msra.mxu0 %v563
    %1178 = vmatprep.subr.mxu0 %v568
    %1179 = vmatpush1.msra.mxu0 %v567
    %1180 = vmatprep.subr.mxu0 %v572
    %1181 = vmatpush1.msra.mxu0 %v571
    %1182 = vmatprep.subr.mxu0 %v576
    %1183 = vmatpush1.msra.mxu0 %v575
    %1184 = vmatprep.subr.mxu0 %v580
    %1185 = vmatpush1.msra.mxu0 %v579
    %1186 = vmatprep.subr.mxu0 %v584
    %1187 = vmatpush1.msra.mxu0 %v583
    %1188 = vmatprep.subr.mxu0 %v588
    %1189 = vmatpush1.msra.mxu0 %v587
    %1190 = vmatprep.subr.mxu0 %v592
    %1191 = vmatpush1.msra.mxu0 %v591
    %1192 = vmatprep.subr.mxu0 %v596
    %1193 = vmatpush1.msra.mxu0 %v595
    %1194 = vmatprep.subr.mxu0 %v600
    %1195 = vmatpush1.msra.mxu0 %v599
    %1196 = vmatprep.subr.mxu0 %v604
    %1197 = vmatpush1.msra.mxu0 %v603
    %1198 = vmatprep.subr.mxu0 %v608
    %1199 = vmatpush1.msra.mxu0 %v607
    %1200 = vmatprep.subr.mxu0 %v612
    %1201 = vmatpush1.msra.mxu0 %v611
    %1202 = vmatprep.subr.mxu0 %v616
    %1203 = vmatpush1.msra.mxu0 %v615
    %1204 = vmatprep.subr.mxu0 %v620
    %1205 = vmatpush1.msra.mxu0 %v619
    %1206 = vmatprep.subr.mxu0 %v624
    %1207 = vmatpush1.msra.mxu0 %v623
    %1208 = vmatprep.mubr.f32.mxu0 %v112
    %1209 = vmatmul.mubr.f32.gmra.mrb[0].mxu0 %v111
    %v1210 = vpop.f32.mrb[0].mxu0
    %v1211 = vadd.f32 %v1140, %v1210
    %v1212 = vpop.f32.mrb[0].mxu0
    %v1213 = vadd.f32 %v1142, %v1212
    %1214 = vdwg.mxu0
    %v1215 = vmax.f32 %v927, 0.0
    %v1216 = vmax.f32 %v929, 0.0
    %v1217 = vmax.f32 %v1211, 0.0
    %v1218 = vmax.f32 %v1213, 0.0
    %v1219 = vld [vmem:[%s4] sm:$0xff]
    %v1220 = vld [vmem:[%s4 + $0x8] sm:$0xff]
    %v1221 = vld [vmem:[%s4 + $0x10] sm:$0xff]
    %v1222 = vld [vmem:[%s4 + $0x18] sm:$0xff]
    %v1223 = vld [vmem:[%s4 + $0x20] sm:$0xff]
    %v1224 = vld [vmem:[%s4 + $0x28] sm:$0xff]
    %v1225 = vld [vmem:[%s4 + $0x30] sm:$0xff]
    %v1226 = vld [vmem:[%s4 + $0x38] sm:$0xff]
    %v1227 = vld [vmem:[%s4 + $0x40] sm:$0xff]
    %v1228 = vld [vmem:[%s4 + $0x48] sm:$0xff]
    %v1229 = vld [vmem:[%s4 + $0x50] sm:$0xff]
    %v1230 = vld [vmem:[%s4 + $0x58] sm:$0xff]
    %v1231 = vld [vmem:[%s4 + $0x60] sm:$0xff]
    %v1232 = vld [vmem:[%s4 + $0x68] sm:$0xff]
    %v1233 = vld [vmem:[%s4 + $0x70] sm:$0xff]
    %v1234 = vld [vmem:[%s4 + $0x78] sm:$0xff]
    %v1235 = vld [vmem:[%s4 + $0x80] sm:$0xff]
    %v1236 = vld [vmem:[%s4 + $0x88] sm:$0xff]
    %v1237 = vld [vmem:[%s4 + $0x90] sm:$0xff]
    %v1238 = vld [vmem:[%s4 + $0x98] sm:$0xff]
    %v1239 = vld [vmem:[%s4 + $0xa0] sm:$0xff]
    %v1240 = vld [vmem:[%s4 + $0xa8] sm:$0xff]
    %v1241 = vld [vmem:[%s4 + $0xb0] sm:$0xff]
    %v1242 = vld [vmem:[%s4 + $0xb8] sm:$0xff]
    %v1243 = vld [vmem:[%s4 + $0xc0] sm:$0xff]
    %v1244 = vld [vmem:[%s4 + $0xc8] sm:$0xff]
    %v1245 = vld [vmem:[%s4 + $0xd0] sm:$0xff]
    %v1246 = vld [vmem:[%s4 + $0xd8] sm:$0xff]
    %v1247 = vld [vmem:[%s4 + $0xe0] sm:$0xff]
    %v1248 = vld [vmem:[%s4 + $0xe8] sm:$0xff]
    %v1249 = vld [vmem:[%s4 + $0xf0] sm:$0xff]
    %v1250 = vld [vmem:[%s4 + $0xf8] sm:$0xff]
    %v1251 = vld [vmem:[%s4 + $0x100] sm:$0xff]
    %v1252 = vld [vmem:[%s4 + $0x108] sm:$0xff]
    %v1253 = vld [vmem:[%s4 + $0x110] sm:$0xff]
    %v1254 = vld [vmem:[%s4 + $0x118] sm:$0xff]
    %v1255 = vld [vmem:[%s4 + $0x120] sm:$0xff]
    %v1256 = vld [vmem:[%s4 + $0x128] sm:$0xff]
    %v1257 = vld [vmem:[%s4 + $0x130] sm:$0xff]
    %v1258 = vld [vmem:[%s4 + $0x138] sm:$0xff]
    %v1259 = vld [vmem:[%s4 + $0x140] sm:$0xff]
    %v1260 = vld [vmem:[%s4 + $0x148] sm:$0xff]
    %v1261 = vld [vmem:[%s4 + $0x150] sm:$0xff]
    %v1262 = vld [vmem:[%s4 + $0x158] sm:$0xff]
    %v1263 = vld [vmem:[%s4 + $0x160] sm:$0xff]
    %v1264 = vld [vmem:[%s4 + $0x168] sm:$0xff]
    %v1265 = vld [vmem:[%s4 + $0x170] sm:$0xff]
    %v1266 = vld [vmem:[%s4 + $0x178] sm:$0xff]
    %v1267 = vld [vmem:[%s4 + $0x180] sm:$0xff]
    %v1268 = vld [vmem:[%s4 + $0x188] sm:$0xff]
    %v1269 = vld [vmem:[%s4 + $0x190] sm:$0xff]
    %v1270 = vld [vmem:[%s4 + $0x198] sm:$0xff]
    %v1271 = vld [vmem:[%s4 + $0x1a0] sm:$0xff]
    %v1272 = vld [vmem:[%s4 + $0x1a8] sm:$0xff]
    %v1273 = vld [vmem:[%s4 + $0x1b0] sm:$0xff]
    %v1274 = vld [vmem:[%s4 + $0x1b8] sm:$0xff]
    %v1275 = vld [vmem:[%s4 + $0x1c0] sm:$0xff]
    %v1276 = vld [vmem:[%s4 + $0x1c8] sm:$0xff]
    %v1277 = vld [vmem:[%s4 + $0x1d0] sm:$0xff]
    %v1278 = vld [vmem:[%s4 + $0x1d8] sm:$0xff]
    %v1279 = vld [vmem:[%s4 + $0x1e0] sm:$0xff]
    %v1280 = vld [vmem:[%s4 + $0x1e8] sm:$0xff]
    %v1281 = vld [vmem:[%s4 + $0x1f0] sm:$0xff]
    %v1282 = vld [vmem:[%s4 + $0x1f8] sm:$0xff]
    %v1283 = vld [vmem:[#allocation9 + $0xa] sm:$0x1]
    %v1284 = vlaneseq
    %v1285 = vshrl.u32 %v1284, 7
    %v1286 = vsub.s32 0, %v1285
    %v1287 = vrot.slane %v1283, %v1286
    %1288 = vmatprep.subr.mxu0 0.0
    %1289 = vmatpush1.msra.mxu0 %v1219
    %1290 = vmatprep.subr.mxu0 0.0
    %1291 = vmatpush1.msra.mxu0 %v1220
    %1292 = vmatprep.subr.mxu0 0.0
    %1293 = vmatpush1.msra.mxu0 %v1221
    %1294 = vmatprep.subr.mxu0 0.0
    %1295 = vmatpush1.msra.mxu0 %v1222
    %1296 = vmatprep.subr.mxu0 0.0
    %1297 = vmatpush1.msra.mxu0 %v1223
    %1298 = vmatprep.subr.mxu0 0.0
    %1299 = vmatpush1.msra.mxu0 %v1224
    %1300 = vmatprep.subr.mxu0 0.0
    %1301 = vmatpush1.msra.mxu0 %v1225
    %1302 = vmatprep.subr.mxu0 0.0
    %1303 = vmatpush1.msra.mxu0 %v1226
    %1304 = vmatprep.subr.mxu0 0.0
    %1305 = vmatpush1.msra.mxu0 %v1227
    %1306 = vmatprep.subr.mxu0 0.0
    %1307 = vmatpush1.msra.mxu0 %v1228
    %1308 = vmatprep.subr.mxu0 0.0
    %1309 = vmatpush1.msra.mxu0 %v1229
    %1310 = vmatprep.subr.mxu0 0.0
    %1311 = vmatpush1.msra.mxu0 %v1230
    %1312 = vmatprep.subr.mxu0 0.0
    %1313 = vmatpush1.msra.mxu0 %v1231
    %1314 = vmatprep.subr.mxu0 0.0
    %1315 = vmatpush1.msra.mxu0 %v1232
    %1316 = vmatprep.subr.mxu0 0.0
    %1317 = vmatpush1.msra.mxu0 %v1233
    %1318 = vmatprep.subr.mxu0 0.0
    %1319 = vmatpush1.msra.mxu0 %v1234
    %1320 = vmatprep.subr.mxu0 0.0
    %1321 = vmatpush1.msra.mxu0 %v1235
    %1322 = vmatprep.subr.mxu0 0.0
    %1323 = vmatpush1.msra.mxu0 %v1236
    %1324 = vmatprep.subr.mxu0 0.0
    %1325 = vmatpush1.msra.mxu0 %v1237
    %1326 = vmatprep.subr.mxu0 0.0
    %1327 = vmatpush1.msra.mxu0 %v1238
    %1328 = vmatprep.subr.mxu0 0.0
    %1329 = vmatpush1.msra.mxu0 %v1239
    %1330 = vmatprep.subr.mxu0 0.0
    %1331 = vmatpush1.msra.mxu0 %v1240
    %1332 = vmatprep.subr.mxu0 0.0
    %1333 = vmatpush1.msra.mxu0 %v1241
    %1334 = vmatprep.subr.mxu0 0.0
    %1335 = vmatpush1.msra.mxu0 %v1242
    %1336 = vmatprep.subr.mxu0 0.0
    %1337 = vmatpush1.msra.mxu0 %v1243
    %1338 = vmatprep.subr.mxu0 0.0
    %1339 = vmatpush1.msra.mxu0 %v1244
    %1340 = vmatprep.subr.mxu0 0.0
    %1341 = vmatpush1.msra.mxu0 %v1245
    %1342 = vmatprep.subr.mxu0 0.0
    %1343 = vmatpush1.msra.mxu0 %v1246
    %1344 = vmatprep.subr.mxu0 0.0
    %1345 = vmatpush1.msra.mxu0 %v1247
    %1346 = vmatprep.subr.mxu0 0.0
    %1347 = vmatpush1.msra.mxu0 %v1248
    %1348 = vmatprep.subr.mxu0 0.0
    %1349 = vmatpush1.msra.mxu0 %v1249
    %1350 = vmatprep.subr.mxu0 0.0
    %1351 = vmatpush1.msra.mxu0 %v1250
    %1352 = vmatprep.mubr.f32.mxu0 %v1216
    %1353 = vmatmul.mubr.f32.gmra.mrb[0].mxu0 %v1215
    %v1354 = vpop.f32.mrb[0].mxu0
    %v1355 = vadd.f32 %v1287, %v1354
    %v1356 = vpop.f32.mrb[0].mxu0
    %1357 = vdwg.mxu0
    %1358 = vmatprep.subr.mxu0 0.0
    %1359 = vmatpush1.msra.mxu0 %v1251
    %1360 = vmatprep.subr.mxu0 0.0
    %1361 = vmatpush1.msra.mxu0 %v1252
    %1362 = vmatprep.subr.mxu0 0.0
    %1363 = vmatpush1.msra.mxu0 %v1253
    %1364 = vmatprep.subr.mxu0 0.0
    %1365 = vmatpush1.msra.mxu0 %v1254
    %1366 = vmatprep.subr.mxu0 0.0
    %1367 = vmatpush1.msra.mxu0 %v1255
    %1368 = vmatprep.subr.mxu0 0.0
    %1369 = vmatpush1.msra.mxu0 %v1256
    %1370 = vmatprep.subr.mxu0 0.0
    %1371 = vmatpush1.msra.mxu0 %v1257
    %1372 = vmatprep.subr.mxu0 0.0
    %1373 = vmatpush1.msra.mxu0 %v1258
    %1374 = vmatprep.subr.mxu0 0.0
    %1375 = vmatpush1.msra.mxu0 %v1259
    %1376 = vmatprep.subr.mxu0 0.0
    %1377 = vmatpush1.msra.mxu0 %v1260
    %1378 = vmatprep.subr.mxu0 0.0
    %1379 = vmatpush1.msra.mxu0 %v1261
    %1380 = vmatprep.subr.mxu0 0.0
    %1381 = vmatpush1.msra.mxu0 %v1262
    %1382 = vmatprep.subr.mxu0 0.0
    %1383 = vmatpush1.msra.mxu0 %v1263
    %1384 = vmatprep.subr.mxu0 0.0
    %1385 = vmatpush1.msra.mxu0 %v1264
    %1386 = vmatprep.subr.mxu0 0.0
    %1387 = vmatpush1.msra.mxu0 %v1265
    %1388 = vmatprep.subr.mxu0 0.0
    %1389 = vmatpush1.msra.mxu0 %v1266
    %1390 = vmatprep.subr.mxu0 0.0
    %1391 = vmatpush1.msra.mxu0 %v1267
    %1392 = vmatprep.subr.mxu0 0.0
    %1393 = vmatpush1.msra.mxu0 %v1268
    %1394 = vmatprep.subr.mxu0 0.0
    %1395 = vmatpush1.msra.mxu0 %v1269
    %1396 = vmatprep.subr.mxu0 0.0
    %1397 = vmatpush1.msra.mxu0 %v1270
    %1398 = vmatprep.subr.mxu0 0.0
    %1399 = vmatpush1.msra.mxu0 %v1271
    %1400 = vmatprep.subr.mxu0 0.0
    %1401 = vmatpush1.msra.mxu0 %v1272
    %1402 = vmatprep.subr.mxu0 0.0
    %1403 = vmatpush1.msra.mxu0 %v1273
    %1404 = vmatprep.subr.mxu0 0.0
    %1405 = vmatpush1.msra.mxu0 %v1274
    %1406 = vmatprep.subr.mxu0 0.0
    %1407 = vmatpush1.msra.mxu0 %v1275
    %1408 = vmatprep.subr.mxu0 0.0
    %1409 = vmatpush1.msra.mxu0 %v1276
    %1410 = vmatprep.subr.mxu0 0.0
    %1411 = vmatpush1.msra.mxu0 %v1277
    %1412 = vmatprep.subr.mxu0 0.0
    %1413 = vmatpush1.msra.mxu0 %v1278
    %1414 = vmatprep.subr.mxu0 0.0
    %1415 = vmatpush1.msra.mxu0 %v1279
    %1416 = vmatprep.subr.mxu0 0.0
    %1417 = vmatpush1.msra.mxu0 %v1280
    %1418 = vmatprep.subr.mxu0 0.0
    %1419 = vmatpush1.msra.mxu0 %v1281
    %1420 = vmatprep.subr.mxu0 0.0
    %1421 = vmatpush1.msra.mxu0 %v1282
    %1422 = vmatprep.mubr.f32.mxu0 %v1218
    %1423 = vmatmul.mubr.f32.gmra.mrb[0].mxu0 %v1217
    %v1424 = vpop.f32.mrb[0].mxu0
    %v1425 = vadd.f32 %v1355, %v1424
    %v1426 = vpop.f32.mrb[0].mxu0
    %1427 = vdwg.mxu0
    %v1428 = vmax.f32 %v1425, 0.0
    %v1429 = vld [vmem:[#allocation10] sm:$0xff]
    %v1430 = vld [vmem:[#allocation10 + $0x8] sm:$0xff]
    %v1431 = vld [vmem:[#allocation10 + $0x10] sm:$0xff]
    %v1432 = vld [vmem:[#allocation10 + $0x18] sm:$0xff]
    %v1433 = vld [vmem:[#allocation10 + $0x20] sm:$0xff]
    %v1434 = vld [vmem:[#allocation10 + $0x28] sm:$0xff]
    %v1435 = vld [vmem:[#allocation10 + $0x30] sm:$0xff]
    %v1436 = vld [vmem:[#allocation10 + $0x38] sm:$0xff]
    %v1437 = vld [vmem:[#allocation9 + $0xb] sm:$0x1]
    %v1438 = vlaneseq
    %v1439 = vshrl.u32 %v1438, 7
    %v1440 = vsub.s32 0, %v1439
    %v1441 = vrot.slane %v1437, %v1440
    %vm1442 = vcmask 523264
    %v1444 = vsel %vm1442, %v1428, 0
    %1446 = vmatprep.subr.mxu0 0.0
    %1447 = vmatpush1.msra.mxu0 %v1429
    %1448 = vmatprep.subr.mxu0 0.0
    %1449 = vmatpush1.msra.mxu0 %v1430
    %1450 = vmatprep.subr.mxu0 0.0
    %1451 = vmatpush1.msra.mxu0 %v1431
    %1452 = vmatprep.subr.mxu0 0.0
    %1453 = vmatpush1.msra.mxu0 %v1432
    %1454 = vmatprep.subr.mxu0 0.0
    %1455 = vmatpush1.msra.mxu0 %v1433
    %1456 = vmatprep.subr.mxu0 0.0
    %1457 = vmatpush1.msra.mxu0 %v1434
    %1458 = vmatprep.subr.mxu0 0.0
    %1459 = vmatpush1.msra.mxu0 %v1435
    %1460 = vmatprep.subr.mxu0 0.0
    %1461 = vmatpush1.msra.mxu0 %v1436
    %1462 = vmatprep.subr.mxu0 0.0
    %1463 = vmatpush1.msra.mxu0 0.0
    %1464 = vmatprep.subr.mxu0 0.0
    %1465 = vmatpush1.msra.mxu0 0.0
    %1466 = vmatprep.subr.mxu0 0.0
    %1467 = vmatpush1.msra.mxu0 0.0
    %1468 = vmatprep.subr.mxu0 0.0
    %1469 = vmatpush1.msra.mxu0 0.0
    %1470 = vmatprep.subr.mxu0 0.0
    %1471 = vmatpush1.msra.mxu0 0.0
    %1472 = vmatprep.subr.mxu0 0.0
    %1473 = vmatpush1.msra.mxu0 0.0
    %1474 = vmatprep.subr.mxu0 0.0
    %1475 = vmatpush1.msra.mxu0 0.0
    %1476 = vmatprep.subr.mxu0 0.0
    %1477 = vmatpush1.msra.mxu0 0.0
    %1478 = vmatprep.subr.mxu0 0.0
    %1479 = vmatpush1.msra.mxu0 0.0
    %1480 = vmatprep.subr.mxu0 0.0
    %1481 = vmatpush1.msra.mxu0 0.0
    %1482 = vmatprep.subr.mxu0 0.0
    %1483 = vmatpush1.msra.mxu0 0.0
    %1484 = vmatprep.subr.mxu0 0.0
    %1485 = vmatpush1.msra.mxu0 0.0
    %1486 = vmatprep.subr.mxu0 0.0
    %1487 = vmatpush1.msra.mxu0 0.0
    %1488 = vmatprep.subr.mxu0 0.0
    %1489 = vmatpush1.msra.mxu0 0.0
    %1490 = vmatprep.subr.mxu0 0.0
    %1491 = vmatpush1.msra.mxu0 0.0
    %1492 = vmatprep.subr.mxu0 0.0
    %1493 = vmatpush1.msra.mxu0 0.0
    %1494 = vmatprep.subr.mxu0 0.0
    %1495 = vmatpush1.msra.mxu0 0.0
    %1496 = vmatprep.subr.mxu0 0.0
    %1497 = vmatpush1.msra.mxu0 0.0
    %1498 = vmatprep.subr.mxu0 0.0
    %1499 = vmatpush1.msra.mxu0 0.0
    %1500 = vmatprep.subr.mxu0 0.0
    %1501 = vmatpush1.msra.mxu0 0.0
    %1502 = vmatprep.subr.mxu0 0.0
    %1503 = vmatpush1.msra.mxu0 0.0
    %1504 = vmatprep.subr.mxu0 0.0
    %1505 = vmatpush1.msra.mxu0 0.0
    %1506 = vmatprep.subr.mxu0 0.0
    %1507 = vmatpush1.msra.mxu0 0.0
    %1508 = vmatprep.subr.mxu0 0.0
    %1509 = vmatpush1.msra.mxu0 0.0
    %1510 = vmatprep.mubr.f32.mxu0 0.0
    %1511 = vmatmul.mubr.f32.gmra.mrb[0].mxu0 %v1444
    %v1512 = vpop.f32.mrb[0].mxu0
    %v1513 = vadd.f32 %v1441, %v1512
    %v1514 = vpop.f32.mrb[0].mxu0
    %1515 = vdwg.mxu0
    %v1516 = vld [vmem:[#allocation4] sm:$0xff]
    %v1517 = vld [vmem:[#allocation9] sm:$0x1]
    %1519 = vset.pattern.permute.xlu0 0
    %1520 = vperm.xlu0 %1519, %v1516
    %v1521 = vpop.permute.xlu0 %1520
    %v1523 = vlaneseq
    %v1524 = vshrl.u32 %v1523, 7
    %v1525 = vsub.s32 0, %v1524
    %v1526 = vrot.slane %v1517, %v1525
    %v1527 = vmul.f32 %v1521, %v1526
    %v1528 = vld [vmem:[#allocation9 + $0x5] sm:$0x1]
    %v1529 = vlaneseq
    %v1530 = vshrl.u32 %v1529, 7
    %v1531 = vsub.s32 0, %v1530
    %v1532 = vrot.slane %v1528, %v1531
    %v1533 = vadd.f32 %v1527, %v1532
    %v1534 = vmax.f32 %v1533, 0.0
    %s1535 = scalar_lea.vmem [#allocation10], 64
    %v1536 = vld [vmem:[%s1535] sm:$0xff]
    %v1537 = vld [vmem:[%s1535 + $0x8] sm:$0xff]
    %v1538 = vld [vmem:[%s1535 + $0x10] sm:$0xff]
    %v1539 = vld [vmem:[%s1535 + $0x18] sm:$0xff]
    %v1540 = vld [vmem:[%s1535 + $0x20] sm:$0xff]
    %v1541 = vld [vmem:[%s1535 + $0x28] sm:$0xff]
    %v1542 = vld [vmem:[%s1535 + $0x30] sm:$0xff]
    %v1543 = vld [vmem:[%s1535 + $0x38] sm:$0xff]
    %v1545 = vsel %vm1442, %v1534, 0
    %1547 = vmatprep.subr.mxu0 0.0
    %1548 = vmatpush1.msra.mxu0 %v1536
    %1549 = vmatprep.subr.mxu0 0.0
    %1550 = vmatpush1.msra.mxu0 %v1537
    %1551 = vmatprep.subr.mxu0 0.0
    %1552 = vmatpush1.msra.mxu0 %v1538
    %1553 = vmatprep.subr.mxu0 0.0
    %1554 = vmatpush1.msra.mxu0 %v1539
    %1555 = vmatprep.subr.mxu0 0.0
    %1556 = vmatpush1.msra.mxu0 %v1540
    %1557 = vmatprep.subr.mxu0 0.0
    %1558 = vmatpush1.msra.mxu0 %v1541
    %1559 = vmatprep.subr.mxu0 0.0
    %1560 = vmatpush1.msra.mxu0 %v1542
    %1561 = vmatprep.subr.mxu0 0.0
    %1562 = vmatpush1.msra.mxu0 %v1543
    %1563 = vmatprep.subr.mxu0 0.0
    %1564 = vmatpush1.msra.mxu0 0.0
    %1565 = vmatprep.subr.mxu0 0.0
    %1566 = vmatpush1.msra.mxu0 0.0
    %1567 = vmatprep.subr.mxu0 0.0
    %1568 = vmatpush1.msra.mxu0 0.0
    %1569 = vmatprep.subr.mxu0 0.0
    %1570 = vmatpush1.msra.mxu0 0.0
    %1571 = vmatprep.subr.mxu0 0.0
    %1572 = vmatpush1.msra.mxu0 0.0
    %1573 = vmatprep.subr.mxu0 0.0
    %1574 = vmatpush1.msra.mxu0 0.0
    %1575 = vmatprep.subr.mxu0 0.0
    %1576 = vmatpush1.msra.mxu0 0.0
    %1577 = vmatprep.subr.mxu0 0.0
    %1578 = vmatpush1.msra.mxu0 0.0
    %1579 = vmatprep.subr.mxu0 0.0
    %1580 = vmatpush1.msra.mxu0 0.0
    %1581 = vmatprep.subr.mxu0 0.0
    %1582 = vmatpush1.msra.mxu0 0.0
    %1583 = vmatprep.subr.mxu0 0.0
    %1584 = vmatpush1.msra.mxu0 0.0
    %1585 = vmatprep.subr.mxu0 0.0
    %1586 = vmatpush1.msra.mxu0 0.0
    %1587 = vmatprep.subr.mxu0 0.0
    %1588 = vmatpush1.msra.mxu0 0.0
    %1589 = vmatprep.subr.mxu0 0.0
    %1590 = vmatpush1.msra.mxu0 0.0
    %1591 = vmatprep.subr.mxu0 0.0
    %1592 = vmatpush1.msra.mxu0 0.0
    %1593 = vmatprep.subr.mxu0 0.0
    %1594 = vmatpush1.msra.mxu0 0.0
    %1595 = vmatprep.subr.mxu0 0.0
    %1596 = vmatpush1.msra.mxu0 0.0
    %1597 = vmatprep.subr.mxu0 0.0
    %1598 = vmatpush1.msra.mxu0 0.0
    %1599 = vmatprep.subr.mxu0 0.0
    %1600 = vmatpush1.msra.mxu0 0.0
    %1601 = vmatprep.subr.mxu0 0.0
    %1602 = vmatpush1.msra.mxu0 0.0
    %1603 = vmatprep.subr.mxu0 0.0
    %1604 = vmatpush1.msra.mxu0 0.0
    %1605 = vmatprep.subr.mxu0 0.0
    %1606 = vmatpush1.msra.mxu0 0.0
    %1607 = vmatprep.subr.mxu0 0.0
    %1608 = vmatpush1.msra.mxu0 0.0
    %1609 = vmatprep.subr.mxu0 0.0
    %1610 = vmatpush1.msra.mxu0 0.0
    %1611 = vmatprep.mubr.f32.mxu0 0.0
    %1612 = vmatmul.mubr.f32.gmra.mrb[0].mxu0 %v1545
    %v1613 = vpop.f32.mrb[0].mxu0
    %v1614 = vadd.f32 0.0, %v1613
    %v1615 = vpop.f32.mrb[0].mxu0
    %1616 = vdwg.mxu0
    %v1617 = vadd.f32 %v1513, %v1614
    %v1618 = vld [vmem:[#allocation9 + $0x1] sm:$0x1]
    %1619 = vset.pattern.permute.xlu0 1
    %1620 = vperm.xlu0 %1619, %v1516
    %v1621 = vpop.permute.xlu0 %1620
    %v1623 = vlaneseq
    %v1624 = vshrl.u32 %v1623, 7
    %v1625 = vsub.s32 0, %v1624
    %v1626 = vrot.slane %v1618, %v1625
    %v1627 = vmul.f32 %v1621, %v1626
    %v1628 = vld [vmem:[#allocation9 + $0x6] sm:$0x1]
    %v1629 = vlaneseq
    %v1630 = vshrl.u32 %v1629, 7
    %v1631 = vsub.s32 0, %v1630
    %v1632 = vrot.slane %v1628, %v1631
    %v1633 = vadd.f32 %v1627, %v1632
    %v1634 = vmax.f32 %v1633, 0.0
    %s1635 = scalar_lea.vmem [#allocation10], 128
    %v1636 = vld [vmem:[%s1635] sm:$0xff]
    %v1637 = vld [vmem:[%s1635 + $0x8] sm:$0xff]
    %v1638 = vld [vmem:[%s1635 + $0x10] sm:$0xff]
    %v1639 = vld [vmem:[%s1635 + $0x18] sm:$0xff]
    %v1640 = vld [vmem:[%s1635 + $0x20] sm:$0xff]
    %v1641 = vld [vmem:[%s1635 + $0x28] sm:$0xff]
    %v1642 = vld [vmem:[%s1635 + $0x30] sm:$0xff]
    %v1643 = vld [vmem:[%s1635 + $0x38] sm:$0xff]
    %v1645 = vsel %vm1442, %v1634, 0
    %1647 = vmatprep.subr.mxu0 0.0
    %1648 = vmatpush1.msra.mxu0 %v1636
    %1649 = vmatprep.subr.mxu0 0.0
    %1650 = vmatpush1.msra.mxu0 %v1637
    %1651 = vmatprep.subr.mxu0 0.0
    %1652 = vmatpush1.msra.mxu0 %v1638
    %1653 = vmatprep.subr.mxu0 0.0
    %1654 = vmatpush1.msra.mxu0 %v1639
    %1655 = vmatprep.subr.mxu0 0.0
    %1656 = vmatpush1.msra.mxu0 %v1640
    %1657 = vmatprep.subr.mxu0 0.0
    %1658 = vmatpush1.msra.mxu0 %v1641
    %1659 = vmatprep.subr.mxu0 0.0
    %1660 = vmatpush1.msra.mxu0 %v1642
    %1661 = vmatprep.subr.mxu0 0.0
    %1662 = vmatpush1.msra.mxu0 %v1643
    %1663 = vmatprep.subr.mxu0 0.0
    %1664 = vmatpush1.msra.mxu0 0.0
    %1665 = vmatprep.subr.mxu0 0.0
    %1666 = vmatpush1.msra.mxu0 0.0
    %1667 = vmatprep.subr.mxu0 0.0
    %1668 = vmatpush1.msra.mxu0 0.0
    %1669 = vmatprep.subr.mxu0 0.0
    %1670 = vmatpush1.msra.mxu0 0.0
    %1671 = vmatprep.subr.mxu0 0.0
    %1672 = vmatpush1.msra.mxu0 0.0
    %1673 = vmatprep.subr.mxu0 0.0
    %1674 = vmatpush1.msra.mxu0 0.0
    %1675 = vmatprep.subr.mxu0 0.0
    %1676 = vmatpush1.msra.mxu0 0.0
    %1677 = vmatprep.subr.mxu0 0.0
    %1678 = vmatpush1.msra.mxu0 0.0
    %1679 = vmatprep.subr.mxu0 0.0
    %1680 = vmatpush1.msra.mxu0 0.0
    %1681 = vmatprep.subr.mxu0 0.0
    %1682 = vmatpush1.msra.mxu0 0.0
    %1683 = vmatprep.subr.mxu0 0.0
    %1684 = vmatpush1.msra.mxu0 0.0
    %1685 = vmatprep.subr.mxu0 0.0
    %1686 = vmatpush1.msra.mxu0 0.0
    %1687 = vmatprep.subr.mxu0 0.0
    %1688 = vmatpush1.msra.mxu0 0.0
    %1689 = vmatprep.subr.mxu0 0.0
    %1690 = vmatpush1.msra.mxu0 0.0
    %1691 = vmatprep.subr.mxu0 0.0
    %1692 = vmatpush1.msra.mxu0 0.0
    %1693 = vmatprep.subr.mxu0 0.0
    %1694 = vmatpush1.msra.mxu0 0.0
    %1695 = vmatprep.subr.mxu0 0.0
    %1696 = vmatpush1.msra.mxu0 0.0
    %1697 = vmatprep.subr.mxu0 0.0
    %1698 = vmatpush1.msra.mxu0 0.0
    %1699 = vmatprep.subr.mxu0 0.0
    %1700 = vmatpush1.msra.mxu0 0.0
    %1701 = vmatprep.subr.mxu0 0.0
    %1702 = vmatpush1.msra.mxu0 0.0
    %1703 = vmatprep.subr.mxu0 0.0
    %1704 = vmatpush1.msra.mxu0 0.0
    %1705 = vmatprep.subr.mxu0 0.0
    %1706 = vmatpush1.msra.mxu0 0.0
    %1707 = vmatprep.subr.mxu0 0.0
    %1708 = vmatpush1.msra.mxu0 0.0
    %1709 = vmatprep.subr.mxu0 0.0
    %1710 = vmatpush1.msra.mxu0 0.0
    %1711 = vmatprep.mubr.f32.mxu0 0.0
    %1712 = vmatmul.mubr.f32.gmra.mrb[0].mxu0 %v1645
    %v1713 = vpop.f32.mrb[0].mxu0
    %v1714 = vadd.f32 0.0, %v1713
    %v1715 = vpop.f32.mrb[0].mxu0
    %1716 = vdwg.mxu0
    %v1717 = vadd.f32 %v1617, %v1714
    %v1718 = vld [vmem:[#allocation9 + $0x2] sm:$0x1]
    %1719 = vset.pattern.permute.xlu0 2
    %1720 = vperm.xlu0 %1719, %v1516
    %v1721 = vpop.permute.xlu0 %1720
    %v1723 = vlaneseq
    %v1724 = vshrl.u32 %v1723, 7
    %v1725 = vsub.s32 0, %v1724
    %v1726 = vrot.slane %v1718, %v1725
    %v1727 = vmul.f32 %v1721, %v1726
    %v1728 = vld [vmem:[#allocation9 + $0x7] sm:$0x1]
    %v1729 = vlaneseq
    %v1730 = vshrl.u32 %v1729, 7
    %v1731 = vsub.s32 0, %v1730
    %v1732 = vrot.slane %v1728, %v1731
    %v1733 = vadd.f32 %v1727, %v1732
    %v1734 = vmax.f32 %v1733, 0.0
    %s1735 = scalar_lea.vmem [#allocation10], 192
    %v1736 = vld [vmem:[%s1735] sm:$0xff]
    %v1737 = vld [vmem:[%s1735 + $0x8] sm:$0xff]
    %v1738 = vld [vmem:[%s1735 + $0x10] sm:$0xff]
    %v1739 = vld [vmem:[%s1735 + $0x18] sm:$0xff]
    %v1740 = vld [vmem:[%s1735 + $0x20] sm:$0xff]
    %v1741 = vld [vmem:[%s1735 + $0x28] sm:$0xff]
    %v1742 = vld [vmem:[%s1735 + $0x30] sm:$0xff]
    %v1743 = vld [vmem:[%s1735 + $0x38] sm:$0xff]
    %v1745 = vsel %vm1442, %v1734, 0
    %1747 = vmatprep.subr.mxu0 0.0
    %1748 = vmatpush1.msra.mxu0 %v1736
    %1749 = vmatprep.subr.mxu0 0.0
    %1750 = vmatpush1.msra.mxu0 %v1737
    %1751 = vmatprep.subr.mxu0 0.0
    %1752 = vmatpush1.msra.mxu0 %v1738
    %1753 = vmatprep.subr.mxu0 0.0
    %1754 = vmatpush1.msra.mxu0 %v1739
    %1755 = vmatprep.subr.mxu0 0.0
    %1756 = vmatpush1.msra.mxu0 %v1740
    %1757 = vmatprep.subr.mxu0 0.0
    %1758 = vmatpush1.msra.mxu0 %v1741
    %1759 = vmatprep.subr.mxu0 0.0
    %1760 = vmatpush1.msra.mxu0 %v1742
    %1761 = vmatprep.subr.mxu0 0.0
    %1762 = vmatpush1.msra.mxu0 %v1743
    %1763 = vmatprep.subr.mxu0 0.0
    %1764 = vmatpush1.msra.mxu0 0.0
    %1765 = vmatprep.subr.mxu0 0.0
    %1766 = vmatpush1.msra.mxu0 0.0
    %1767 = vmatprep.subr.mxu0 0.0
    %1768 = vmatpush1.msra.mxu0 0.0
    %1769 = vmatprep.subr.mxu0 0.0
    %1770 = vmatpush1.msra.mxu0 0.0
    %1771 = vmatprep.subr.mxu0 0.0
    %1772 = vmatpush1.msra.mxu0 0.0
    %1773 = vmatprep.subr.mxu0 0.0
    %1774 = vmatpush1.msra.mxu0 0.0
    %1775 = vmatprep.subr.mxu0 0.0
    %1776 = vmatpush1.msra.mxu0 0.0
    %1777 = vmatprep.subr.mxu0 0.0
    %1778 = vmatpush1.msra.mxu0 0.0
    %1779 = vmatprep.subr.mxu0 0.0
    %1780 = vmatpush1.msra.mxu0 0.0
    %1781 = vmatprep.subr.mxu0 0.0
    %1782 = vmatpush1.msra.mxu0 0.0
    %1783 = vmatprep.subr.mxu0 0.0
    %1784 = vmatpush1.msra.mxu0 0.0
    %1785 = vmatprep.subr.mxu0 0.0
    %1786 = vmatpush1.msra.mxu0 0.0
    %1787 = vmatprep.subr.mxu0 0.0
    %1788 = vmatpush1.msra.mxu0 0.0
    %1789 = vmatprep.subr.mxu0 0.0
    %1790 = vmatpush1.msra.mxu0 0.0
    %1791 = vmatprep.subr.mxu0 0.0
    %1792 = vmatpush1.msra.mxu0 0.0
    %1793 = vmatprep.subr.mxu0 0.0
    %1794 = vmatpush1.msra.mxu0 0.0
    %1795 = vmatprep.subr.mxu0 0.0
    %1796 = vmatpush1.msra.mxu0 0.0
    %1797 = vmatprep.subr.mxu0 0.0
    %1798 = vmatpush1.msra.mxu0 0.0
    %1799 = vmatprep.subr.mxu0 0.0
    %1800 = vmatpush1.msra.mxu0 0.0
    %1801 = vmatprep.subr.mxu0 0.0
    %1802 = vmatpush1.msra.mxu0 0.0
    %1803 = vmatprep.subr.mxu0 0.0
    %1804 = vmatpush1.msra.mxu0 0.0
    %1805 = vmatprep.subr.mxu0 0.0
    %1806 = vmatpush1.msra.mxu0 0.0
    %1807 = vmatprep.subr.mxu0 0.0
    %1808 = vmatpush1.msra.mxu0 0.0
    %1809 = vmatprep.subr.mxu0 0.0
    %1810 = vmatpush1.msra.mxu0 0.0
    %1811 = vmatprep.mubr.f32.mxu0 0.0
    %1812 = vmatmul.mubr.f32.gmra.mrb[0].mxu0 %v1745
    %v1813 = vpop.f32.mrb[0].mxu0
    %v1814 = vadd.f32 0.0, %v1813
    %v1815 = vpop.f32.mrb[0].mxu0
    %1816 = vdwg.mxu0
    %v1817 = vadd.f32 %v1717, %v1814
    %v1818 = vld [vmem:[#allocation9 + $0x3] sm:$0x1]
    %1819 = vset.pattern.permute.xlu0 3
    %1820 = vperm.xlu0 %1819, %v1516
    %v1821 = vpop.permute.xlu0 %1820
    %v1823 = vlaneseq
    %v1824 = vshrl.u32 %v1823, 7
    %v1825 = vsub.s32 0, %v1824
    %v1826 = vrot.slane %v1818, %v1825
    %v1827 = vmul.f32 %v1821, %v1826
    %v1828 = vld [vmem:[#allocation9 + $0x8] sm:$0x1]
    %v1829 = vlaneseq
    %v1830 = vshrl.u32 %v1829, 7
    %v1831 = vsub.s32 0, %v1830
    %v1832 = vrot.slane %v1828, %v1831
    %v1833 = vadd.f32 %v1827, %v1832
    %v1834 = vmax.f32 %v1833, 0.0
    %s1835 = scalar_lea.vmem [#allocation10], 256
    %v1836 = vld [vmem:[%s1835] sm:$0xff]
    %v1837 = vld [vmem:[%s1835 + $0x8] sm:$0xff]
    %v1838 = vld [vmem:[%s1835 + $0x10] sm:$0xff]
    %v1839 = vld [vmem:[%s1835 + $0x18] sm:$0xff]
    %v1840 = vld [vmem:[%s1835 + $0x20] sm:$0xff]
    %v1841 = vld [vmem:[%s1835 + $0x28] sm:$0xff]
    %v1842 = vld [vmem:[%s1835 + $0x30] sm:$0xff]
    %v1843 = vld [vmem:[%s1835 + $0x38] sm:$0xff]
    %v1845 = vsel %vm1442, %v1834, 0
    %1847 = vmatprep.subr.mxu0 0.0
    %1848 = vmatpush1.msra.mxu0 %v1836
    %1849 = vmatprep.subr.mxu0 0.0
    %1850 = vmatpush1.msra.mxu0 %v1837
    %1851 = vmatprep.subr.mxu0 0.0
    %1852 = vmatpush1.msra.mxu0 %v1838
    %1853 = vmatprep.subr.mxu0 0.0
    %1854 = vmatpush1.msra.mxu0 %v1839
    %1855 = vmatprep.subr.mxu0 0.0
    %1856 = vmatpush1.msra.mxu0 %v1840
    %1857 = vmatprep.subr.mxu0 0.0
    %1858 = vmatpush1.msra.mxu0 %v1841
    %1859 = vmatprep.subr.mxu0 0.0
    %1860 = vmatpush1.msra.mxu0 %v1842
    %1861 = vmatprep.subr.mxu0 0.0
    %1862 = vmatpush1.msra.mxu0 %v1843
    %1863 = vmatprep.subr.mxu0 0.0
    %1864 = vmatpush1.msra.mxu0 0.0
    %1865 = vmatprep.subr.mxu0 0.0
    %1866 = vmatpush1.msra.mxu0 0.0
    %1867 = vmatprep.subr.mxu0 0.0
    %1868 = vmatpush1.msra.mxu0 0.0
    %1869 = vmatprep.subr.mxu0 0.0
    %1870 = vmatpush1.msra.mxu0 0.0
    %1871 = vmatprep.subr.mxu0 0.0
    %1872 = vmatpush1.msra.mxu0 0.0
    %1873 = vmatprep.subr.mxu0 0.0
    %1874 = vmatpush1.msra.mxu0 0.0
    %1875 = vmatprep.subr.mxu0 0.0
    %1876 = vmatpush1.msra.mxu0 0.0
    %1877 = vmatprep.subr.mxu0 0.0
    %1878 = vmatpush1.msra.mxu0 0.0
    %1879 = vmatprep.subr.mxu0 0.0
    %1880 = vmatpush1.msra.mxu0 0.0
    %1881 = vmatprep.subr.mxu0 0.0
    %1882 = vmatpush1.msra.mxu0 0.0
    %1883 = vmatprep.subr.mxu0 0.0
    %1884 = vmatpush1.msra.mxu0 0.0
    %1885 = vmatprep.subr.mxu0 0.0
    %1886 = vmatpush1.msra.mxu0 0.0
    %1887 = vmatprep.subr.mxu0 0.0
    %1888 = vmatpush1.msra.mxu0 0.0
    %1889 = vmatprep.subr.mxu0 0.0
    %1890 = vmatpush1.msra.mxu0 0.0
    %1891 = vmatprep.subr.mxu0 0.0
    %1892 = vmatpush1.msra.mxu0 0.0
    %1893 = vmatprep.subr.mxu0 0.0
    %1894 = vmatpush1.msra.mxu0 0.0
    %1895 = vmatprep.subr.mxu0 0.0
    %1896 = vmatpush1.msra.mxu0 0.0
    %1897 = vmatprep.subr.mxu0 0.0
    %1898 = vmatpush1.msra.mxu0 0.0
    %1899 = vmatprep.subr.mxu0 0.0
    %1900 = vmatpush1.msra.mxu0 0.0
    %1901 = vmatprep.subr.mxu0 0.0
    %1902 = vmatpush1.msra.mxu0 0.0
    %1903 = vmatprep.subr.mxu0 0.0
    %1904 = vmatpush1.msra.mxu0 0.0
    %1905 = vmatprep.subr.mxu0 0.0
    %1906 = vmatpush1.msra.mxu0 0.0
    %1907 = vmatprep.subr.mxu0 0.0
    %1908 = vmatpush1.msra.mxu0 0.0
    %1909 = vmatprep.subr.mxu0 0.0
    %1910 = vmatpush1.msra.mxu0 0.0
    %1911 = vmatprep.mubr.f32.mxu0 0.0
    %1912 = vmatmul.mubr.f32.gmra.mrb[0].mxu0 %v1845
    %v1913 = vpop.f32.mrb[0].mxu0
    %v1914 = vadd.f32 0.0, %v1913
    %v1915 = vpop.f32.mrb[0].mxu0
    %1916 = vdwg.mxu0
    %v1917 = vadd.f32 %v1817, %v1914
    %v1918 = vld [vmem:[#allocation9 + $0x4] sm:$0x1]
    %1919 = vset.pattern.permute.xlu0 4
    %1920 = vperm.xlu0 %1919, %v1516
    %v1921 = vpop.permute.xlu0 %1920
    %v1923 = vlaneseq
    %v1924 = vshrl.u32 %v1923, 7
    %v1925 = vsub.s32 0, %v1924
    %v1926 = vrot.slane %v1918, %v1925
    %v1927 = vmul.f32 %v1921, %v1926
    %v1928 = vld [vmem:[#allocation9 + $0x9] sm:$0x1]
    %v1929 = vlaneseq
    %v1930 = vshrl.u32 %v1929, 7
    %v1931 = vsub.s32 0, %v1930
    %v1932 = vrot.slane %v1928, %v1931
    %v1933 = vadd.f32 %v1927, %v1932
    %v1934 = vmax.f32 %v1933, 0.0
    %s1935 = scalar_lea.vmem [#allocation10], 320
    %v1936 = vld [vmem:[%s1935] sm:$0xff]
    %v1937 = vld [vmem:[%s1935 + $0x8] sm:$0xff]
    %v1938 = vld [vmem:[%s1935 + $0x10] sm:$0xff]
    %v1939 = vld [vmem:[%s1935 + $0x18] sm:$0xff]
    %v1940 = vld [vmem:[%s1935 + $0x20] sm:$0xff]
    %v1941 = vld [vmem:[%s1935 + $0x28] sm:$0xff]
    %v1942 = vld [vmem:[%s1935 + $0x30] sm:$0xff]
    %v1943 = vld [vmem:[%s1935 + $0x38] sm:$0xff]
    %v1945 = vsel %vm1442, %v1934, 0
    %1947 = vmatprep.subr.mxu0 0.0
    %1948 = vmatpush1.msra.mxu0 %v1936
    %1949 = vmatprep.subr.mxu0 0.0
    %1950 = vmatpush1.msra.mxu0 %v1937
    %1951 = vmatprep.subr.mxu0 0.0
    %1952 = vmatpush1.msra.mxu0 %v1938
    %1953 = vmatprep.subr.mxu0 0.0
    %1954 = vmatpush1.msra.mxu0 %v1939
    %1955 = vmatprep.subr.mxu0 0.0
    %1956 = vmatpush1.msra.mxu0 %v1940
    %1957 = vmatprep.subr.mxu0 0.0
    %1958 = vmatpush1.msra.mxu0 %v1941
    %1959 = vmatprep.subr.mxu0 0.0
    %1960 = vmatpush1.msra.mxu0 %v1942
    %1961 = vmatprep.subr.mxu0 0.0
    %1962 = vmatpush1.msra.mxu0 %v1943
    %1963 = vmatprep.subr.mxu0 0.0
    %1964 = vmatpush1.msra.mxu0 0.0
    %1965 = vmatprep.subr.mxu0 0.0
    %1966 = vmatpush1.msra.mxu0 0.0
    %1967 = vmatprep.subr.mxu0 0.0
    %1968 = vmatpush1.msra.mxu0 0.0
    %1969 = vmatprep.subr.mxu0 0.0
    %1970 = vmatpush1.msra.mxu0 0.0
    %1971 = vmatprep.subr.mxu0 0.0
    %1972 = vmatpush1.msra.mxu0 0.0
    %1973 = vmatprep.subr.mxu0 0.0
    %1974 = vmatpush1.msra.mxu0 0.0
    %1975 = vmatprep.subr.mxu0 0.0
    %1976 = vmatpush1.msra.mxu0 0.0
    %1977 = vmatprep.subr.mxu0 0.0
    %1978 = vmatpush1.msra.mxu0 0.0
    %1979 = vmatprep.subr.mxu0 0.0
    %1980 = vmatpush1.msra.mxu0 0.0
    %1981 = vmatprep.subr.mxu0 0.0
    %1982 = vmatpush1.msra.mxu0 0.0
    %1983 = vmatprep.subr.mxu0 0.0
    %1984 = vmatpush1.msra.mxu0 0.0
    %1985 = vmatprep.subr.mxu0 0.0
    %1986 = vmatpush1.msra.mxu0 0.0
    %1987 = vmatprep.subr.mxu0 0.0
    %1988 = vmatpush1.msra.mxu0 0.0
    %1989 = vmatprep.subr.mxu0 0.0
    %1990 = vmatpush1.msra.mxu0 0.0
    %1991 = vmatprep.subr.mxu0 0.0
    %1992 = vmatpush1.msra.mxu0 0.0
    %1993 = vmatprep.subr.mxu0 0.0
    %1994 = vmatpush1.msra.mxu0 0.0
    %1995 = vmatprep.subr.mxu0 0.0
    %1996 = vmatpush1.msra.mxu0 0.0
    %1997 = vmatprep.subr.mxu0 0.0
    %1998 = vmatpush1.msra.mxu0 0.0
    %1999 = vmatprep.subr.mxu0 0.0
    %2000 = vmatpush1.msra.mxu0 0.0
    %2001 = vmatprep.subr.mxu0 0.0
    %2002 = vmatpush1.msra.mxu0 0.0
    %2003 = vmatprep.subr.mxu0 0.0
    %2004 = vmatpush1.msra.mxu0 0.0
    %2005 = vmatprep.subr.mxu0 0.0
    %2006 = vmatpush1.msra.mxu0 0.0
    %2007 = vmatprep.subr.mxu0 0.0
    %2008 = vmatpush1.msra.mxu0 0.0
    %2009 = vmatprep.subr.mxu0 0.0
    %2010 = vmatpush1.msra.mxu0 0.0
    %2011 = vmatprep.mubr.f32.mxu0 0.0
    %2012 = vmatmul.mubr.f32.gmra.mrb[0].mxu0 %v1945
    %v2013 = vpop.f32.mrb[0].mxu0
    %v2014 = vadd.f32 0.0, %v2013
    %v2015 = vpop.f32.mrb[0].mxu0
    %2016 = vdwg.mxu0
    %v2017 = vadd.f32 %v1917, %v2014
    %v2018 = vmax.f32 %v2017, 0.0
    %v2019 = vld [vmem:[%s7] sm:$0xff]
    %v2020 = vld [vmem:[%s7 + $0x8] sm:$0xff]
    %v2021 = vld [vmem:[%s7 + $0x10] sm:$0xff]
    %v2022 = vld [vmem:[%s7 + $0x18] sm:$0xff]
    %v2023 = vld [vmem:[%s7 + $0x20] sm:$0xff]
    %v2024 = vld [vmem:[%s7 + $0x28] sm:$0xff]
    %v2025 = vld [vmem:[%s7 + $0x30] sm:$0xff]
    %v2026 = vld [vmem:[%s7 + $0x38] sm:$0xff]
    %v2027 = vld [vmem:[#allocation9 + $0xc] sm:$0x1]
    %v2028 = vlaneseq
    %v2029 = vshrl.u32 %v2028, 7
    %v2030 = vsub.s32 0, %v2029
    %v2031 = vrot.slane %v2027, %v2030
    %v2033 = vsel %vm1442, %v2018, 0
    %2035 = vmatprep.subr.mxu0 0.0
    %2036 = vmatpush1.msra.mxu0 %v2019
    %2037 = vmatprep.subr.mxu0 0.0
    %2038 = vmatpush1.msra.mxu0 %v2020
    %2039 = vmatprep.subr.mxu0 0.0
    %2040 = vmatpush1.msra.mxu0 %v2021
    %2041 = vmatprep.subr.mxu0 0.0
    %2042 = vmatpush1.msra.mxu0 %v2022
    %2043 = vmatprep.subr.mxu0 0.0
    %2044 = vmatpush1.msra.mxu0 %v2023
    %2045 = vmatprep.subr.mxu0 0.0
    %2046 = vmatpush1.msra.mxu0 %v2024
    %2047 = vmatprep.subr.mxu0 0.0
    %2048 = vmatpush1.msra.mxu0 %v2025
    %2049 = vmatprep.subr.mxu0 0.0
    %2050 = vmatpush1.msra.mxu0 %v2026
    %2051 = vmatprep.subr.mxu0 0.0
    %2052 = vmatpush1.msra.mxu0 0.0
    %2053 = vmatprep.subr.mxu0 0.0
    %2054 = vmatpush1.msra.mxu0 0.0
    %2055 = vmatprep.subr.mxu0 0.0
    %2056 = vmatpush1.msra.mxu0 0.0
    %2057 = vmatprep.subr.mxu0 0.0
    %2058 = vmatpush1.msra.mxu0 0.0
    %2059 = vmatprep.subr.mxu0 0.0
    %2060 = vmatpush1.msra.mxu0 0.0
    %2061 = vmatprep.subr.mxu0 0.0
    %2062 = vmatpush1.msra.mxu0 0.0
    %2063 = vmatprep.subr.mxu0 0.0
    %2064 = vmatpush1.msra.mxu0 0.0
    %2065 = vmatprep.subr.mxu0 0.0
    %2066 = vmatpush1.msra.mxu0 0.0
    %2067 = vmatprep.subr.mxu0 0.0
    %2068 = vmatpush1.msra.mxu0 0.0
    %2069 = vmatprep.subr.mxu0 0.0
    %2070 = vmatpush1.msra.mxu0 0.0
    %2071 = vmatprep.subr.mxu0 0.0
    %2072 = vmatpush1.msra.mxu0 0.0
    %2073 = vmatprep.subr.mxu0 0.0
    %2074 = vmatpush1.msra.mxu0 0.0
    %2075 = vmatprep.subr.mxu0 0.0
    %2076 = vmatpush1.msra.mxu0 0.0
    %2077 = vmatprep.subr.mxu0 0.0
    %2078 = vmatpush1.msra.mxu0 0.0
    %2079 = vmatprep.subr.mxu0 0.0
    %2080 = vmatpush1.msra.mxu0 0.0
    %2081 = vmatprep.subr.mxu0 0.0
    %2082 = vmatpush1.msra.mxu0 0.0
    %2083 = vmatprep.subr.mxu0 0.0
    %2084 = vmatpush1.msra.mxu0 0.0
    %2085 = vmatprep.subr.mxu0 0.0
    %2086 = vmatpush1.msra.mxu0 0.0
    %2087 = vmatprep.subr.mxu0 0.0
    %2088 = vmatpush1.msra.mxu0 0.0
    %2089 = vmatprep.subr.mxu0 0.0
    %2090 = vmatpush1.msra.mxu0 0.0
    %2091 = vmatprep.subr.mxu0 0.0
    %2092 = vmatpush1.msra.mxu0 0.0
    %2093 = vmatprep.subr.mxu0 0.0
    %2094 = vmatpush1.msra.mxu0 0.0
    %2095 = vmatprep.subr.mxu0 0.0
    %2096 = vmatpush1.msra.mxu0 0.0
    %2097 = vmatprep.subr.mxu0 0.0
    %2098 = vmatpush1.msra.mxu0 0.0
    %2099 = vmatprep.mubr.f32.mxu0 0.0
    %2100 = vmatmul.mubr.f32.gmra.mrb[0].mxu0 %v2033
    %v2101 = vpop.f32.mrb[0].mxu0
    %v2102 = vadd.f32 %v2031, %v2101
    %v2103 = vpop.f32.mrb[0].mxu0
    %2104 = vdwg.mxu0
    %vm2105 = vcmask 31744
    %2106 = vst.msk [vmem:[%s8] sm:$0xff] %vm2105, %v2102
    // Predicated region
    $region58: #{tpu_custom_call.1} parent=1 // pred_check
      _
    $region59: #{tpu_custom_call.1} parent=1 // pred_check_branch
      %2108 = sbr.rel (0) target = $region61
    $region60: #{tpu_custom_call.1} parent=1 // pred_region
      _
    $region61: #{tpu_custom_call.1} parent=1 // pred_fallthru
      _
    // Predicated region
    $region62: #{tpu_custom_call.1} parent=1 // pred_check
      _
    $region63: #{tpu_custom_call.1} parent=1 // pred_check_branch
      %2110 = sbr.rel (0) target = $region65
    $region64: #{tpu_custom_call.1} parent=1 // pred_region
      _
    $region65: #{tpu_custom_call.1} parent=1 // pred_fallthru
      _
    %2111 = vsyncpa [#allocation3], 1
    %2112 = vsyncpa [#allocation5], 1
    %2113 = vsyncpa [#allocation8], 1
    %2114 = vsyncpa [#allocation11], 1

</llo_original>
